<compile_context>
chip_gen: v6e
topology: v6e:2x2x1
jax: 0.10.0
libtpu: 0.0.40
codegen_flags: <defaults>
</compile_context>

<pallas_src>
import jax
import jax.numpy as jnp
from jax.experimental import pallas as pl
from jax.experimental.pallas import tpu as pltpu


def attn_kernel(scale_ref, q_ref, k_ref, v_ref, o_ref):
    # scale_ref: (1,) f32 in SMEM (scalar-prefetched inv_scale_factor)
    # q/k/v_ref: (T, S, D) bf16 VMEM tiles; o_ref: (T, S, D) f32 VMEM tile.
    n_heads = q_ref.shape[0]
    r = 1.0 / scale_ref[0]          # one scalar reciprocal on the scalar core

    # Statically-unrolled per-head loop: softmax of head h overlaps the MXU
    # work of head h+1, and live f32 temporaries stay at one (S, S) tile.
    for h in range(n_heads):
        q = q_ref[h]                # (S, D) bf16
        k = k_ref[h]                # (S, D) bf16
        v = v_ref[h]                # (S, D) bf16

        # Q @ K^T with the transpose folded into the contraction:
        # bf16 operands, f32 accumulation on the MXU.
        s = jax.lax.dot_general(
            q, k,
            dimension_numbers=(((1,), (1,)), ((), ())),
            preferred_element_type=jnp.float32,
        )
        # Scale in f32 (S == D here, so this costs the same as pre-scaling Q).
        s = s * r

        # Numerically stable softmax along the last dim (f32).
        m = jnp.max(s, axis=-1, keepdims=True)
        p = jnp.exp(s - m)
        denom = jnp.sum(p, axis=-1, keepdims=True)
        soft = p * pl.reciprocal(denom, approx=False)   # exact EUP reciprocal

        # dropout_p == 0.0 -> identity.
        # TODO(synk): nonzero dropout_p would need a pltpu.prng_seed /
        # pltpu.prng_random_bits mask-and-rescale path here.

        # soft @ V: bf16 operands, f32 accumulation on the MXU.
        out = jax.lax.dot_general(
            soft.astype(jnp.bfloat16), v,
            dimension_numbers=(((1,), (0,)), ((), ())),
            preferred_element_type=jnp.float32,
        )
        o_ref[h] = out.astype(o_ref.dtype)


def attention(Q, K, V, inv_scale_factor, dropout_p=0.0):
    if dropout_p != 0.0:
        # TODO(synk): dropout with p > 0 is not implemented in the kernel.
        raise NotImplementedError("dropout_p != 0.0 is not supported")

    B, H, S, D = Q.shape
    BH = B * H

    # Largest head tile <= 4 that divides BH.  Keeping it <= 4 (grid >= 2 for
    # BH == 8) leaves a parallel axis for v7x's two TensorCores and gives the
    # auto-pipeline at least two stages to hide the input DMA.
    bh_tile = 1
    for t in (4, 2, 1):
        if BH % t == 0:
            bh_tile = t
            break

    # bf16 at the HBM boundary: halves Q/K/V DMA bytes and feeds the MXU's
    # fast bf16 path directly.  Output stays f32 (spec dtype).
    q = Q.reshape(BH, S, D).astype(jnp.bfloat16)
    k = K.reshape(BH, S, D).astype(jnp.bfloat16)
    v = V.reshape(BH, S, D).astype(jnp.bfloat16)
    scale = jnp.asarray(inv_scale_factor, dtype=jnp.float32).reshape(1)

    in_tile = pl.BlockSpec((bh_tile, S, D), lambda i, scale_ref: (i, 0, 0))
    out_tile = pl.BlockSpec((bh_tile, S, D), lambda i, scale_ref: (i, 0, 0))

    out = pl.pallas_call(
        attn_kernel,
        out_shape=jax.ShapeDtypeStruct((BH, S, D), jnp.float32),
        grid_spec=pltpu.PrefetchScalarGridSpec(
            num_scalar_prefetch=1,
            grid=(BH // bh_tile,),
            in_specs=[in_tile, in_tile, in_tile],
            out_specs=out_tile,
        ),
        compiler_params=pltpu.CompilerParams(
            dimension_semantics=("parallel",),
        ),
    )(scale, q, k, v)
    return out.reshape(B, H, S, D).astype(Q.dtype)


def reference(Q, K, V, inv_scale_factor):
    qk = jnp.einsum("bhqd,bhkd->bhqk", Q, K,
                    precision=jax.lax.Precision.HIGHEST) / inv_scale_factor
    soft = jax.nn.softmax(qk, axis=-1)
    return jnp.einsum("bhqk,bhkd->bhqd", soft, V,
                      precision=jax.lax.Precision.HIGHEST)


if __name__ == "__main__":
    key = jax.random.PRNGKey(0)
    kq, kk, kv = jax.random.split(key, 3)
    B, H, S, D = 1, 8, 128, 128
    Q = jax.random.normal(kq, (B, H, S, D), dtype=jnp.float32)
    K = jax.random.normal(kk, (B, H, S, D), dtype=jnp.float32)
    V = jax.random.normal(kv, (B, H, S, D), dtype=jnp.float32)
    inv_scale_factor = jnp.array([1.0], dtype=jnp.float32)
    dropout_p = 0.0

    out = attention(Q, K, V, inv_scale_factor, dropout_p)
    out = jax.block_until_ready(out)

    assert out.shape == (B, H, S, D)
    assert bool(jnp.all(jnp.isfinite(out)))

    # Validate against the reference evaluated on the same bf16-rounded inputs
    # (the wrapper's documented precision choice): this isolates kernel
    # correctness from the deliberate f32 -> bf16 boundary rounding.  The
    # remaining difference is only the bf16 rounding of the softmax weights
    # fed to the PV matmul (<~1e-2 absolute worst case).
    Qb = Q.astype(jnp.bfloat16).astype(jnp.float32)
    Kb = K.astype(jnp.bfloat16).astype(jnp.float32)
    Vb = V.astype(jnp.bfloat16).astype(jnp.float32)
    ref = reference(Qb, Kb, Vb, inv_scale_factor[0])
    assert jnp.allclose(out, ref, atol=3e-2, rtol=2e-2), float(
        jnp.max(jnp.abs(out - ref)))

    print("KERNEL_OK")
</pallas_src>

<mosaic_0001>
module attributes {stable_mosaic.version = 11 : i64} {
  func.func @attn_kernel(%arg0: i32, %arg1: memref<1xf32, #tpu.memory_space<smem>>, %arg2: memref<4x128x128xbf16, #tpu.memory_space<vmem>>, %arg3: memref<4x128x128xbf16, #tpu.memory_space<vmem>>, %arg4: memref<4x128x128xbf16, #tpu.memory_space<vmem>>, %arg5: memref<4x128x128xf32, #tpu.memory_space<vmem>>) attributes {dimension_semantics = [#tpu.dimension_semantics<parallel>], iteration_bounds = array<i64: 2>, scalar_prefetch = 1 : i64, scratch_operands = 0 : i64, tpu.core_type = #tpu.core_type<tc>, window_params = [{transform_indices = @transform_0, window_bounds = array<i64: 4, 128, 128>}, {transform_indices = @transform_1, window_bounds = array<i64: 4, 128, 128>}, {transform_indices = @transform_2, window_bounds = array<i64: 4, 128, 128>}, {transform_indices = @transform_3, window_bounds = array<i64: 4, 128, 128>}]} {
    %c0 = arith.constant 0 : index
    %0 = memref.load %arg1[%c0] : memref<1xf32, #tpu.memory_space<smem>>
    %cst = arith.constant 1.000000e+00 : f32
    %1 = arith.divf %cst, %0 : f32
    %c0_0 = arith.constant 0 : index
    %c0_1 = arith.constant 0 : index
    %c0_2 = arith.constant 0 : index
    %2 = vector.load %arg2[%c0_0, %c0_1, %c0_2] : memref<4x128x128xbf16, #tpu.memory_space<vmem>>, vector<1x128x128xbf16>
    %3 = vector.shape_cast %2 : vector<1x128x128xbf16> to vector<128x128xbf16>
    %c0_3 = arith.constant 0 : index
    %c0_4 = arith.constant 0 : index
    %c0_5 = arith.constant 0 : index
    %4 = vector.load %arg3[%c0_3, %c0_4, %c0_5] : memref<4x128x128xbf16, #tpu.memory_space<vmem>>, vector<1x128x128xbf16>
    %5 = vector.shape_cast %4 : vector<1x128x128xbf16> to vector<128x128xbf16>
    %c0_6 = arith.constant 0 : index
    %c0_7 = arith.constant 0 : index
    %c0_8 = arith.constant 0 : index
    %6 = vector.load %arg4[%c0_6, %c0_7, %c0_8] : memref<4x128x128xbf16, #tpu.memory_space<vmem>>, vector<1x128x128xbf16>
    %7 = vector.shape_cast %6 : vector<1x128x128xbf16> to vector<128x128xbf16>
    %cst_9 = arith.constant dense<0.000000e+00> : vector<128x128xf32>
    %8 = tpu.matmul %3, %5, %cst_9 {dimension_numbers = #tpu.dot_dimension_numbers<[1], [1], [0], [0], [0, 0, 1, 0], [], []>} : vector<128x128xbf16>, vector<128x128xbf16>, vector<128x128xf32> -> vector<128x128xf32>
    %9 = vector.broadcast %1 : f32 to vector<128x128xf32>
    %10 = arith.mulf %8, %9 : vector<128x128xf32>
    %cst_10 = arith.constant dense<0xFF800000> : vector<128xf32>
    %11 = vector.multi_reduction <maximumf>, %10, %cst_10 [1] : vector<128x128xf32> to vector<128xf32>
    %12 = vector.shape_cast %11 : vector<128xf32> to vector<128x1xf32>
    %13 = vector.broadcast %12 : vector<128x1xf32> to vector<128x128xf32>
    %14 = arith.subf %10, %13 : vector<128x128xf32>
    %15 = math.exp %14 : vector<128x128xf32>
    %cst_11 = arith.constant dense<0.000000e+00> : vector<128xf32>
    %16 = vector.multi_reduction <add>, %15, %cst_11 [1] : vector<128x128xf32> to vector<128xf32>
    %17 = vector.shape_cast %16 : vector<128xf32> to vector<128x1xf32>
    %18 = tpu.reciprocal %17 : vector<128x1xf32> -> vector<128x1xf32>
    %19 = vector.broadcast %18 : vector<128x1xf32> to vector<128x128xf32>
    %20 = arith.mulf %15, %19 : vector<128x128xf32>
    %21 = arith.truncf %20 : vector<128x128xf32> to vector<128x128xbf16>
    %cst_12 = arith.constant dense<0.000000e+00> : vector<128x128xf32>
    %22 = tpu.matmul %21, %7, %cst_12 {dimension_numbers = #tpu.dot_dimension_numbers<[1], [0], [0], [1], [0, 0, 1, 1], [], []>} : vector<128x128xbf16>, vector<128x128xbf16>, vector<128x128xf32> -> vector<128x128xf32>
    %c0_13 = arith.constant 0 : index
    %c0_14 = arith.constant 0 : index
    %c0_15 = arith.constant 0 : index
    %23 = vector.load %arg5[%c0_13, %c0_14, %c0_15] : memref<4x128x128xf32, #tpu.memory_space<vmem>>, vector<1x128x128xf32>
    %24 = vector.shape_cast %23 : vector<1x128x128xf32> to vector<128x128xf32>
    %25 = vector.shape_cast %22 : vector<128x128xf32> to vector<1x128x128xf32>
    tpu.vector_store %arg5[%c0_13, %c0_14, %c0_15], %25 {strides = array<i32>} : memref<4x128x128xf32, #tpu.memory_space<vmem>>, vector<1x128x128xf32>,
    %c1 = arith.constant 1 : index
    %c0_16 = arith.constant 0 : index
    %c0_17 = arith.constant 0 : index
    %26 = vector.load %arg2[%c1, %c0_16, %c0_17] : memref<4x128x128xbf16, #tpu.memory_space<vmem>>, vector<1x128x128xbf16>
    %27 = vector.shape_cast %26 : vector<1x128x128xbf16> to vector<128x128xbf16>
    %c1_18 = arith.constant 1 : index
    %c0_19 = arith.constant 0 : index
    %c0_20 = arith.constant 0 : index
    %28 = vector.load %arg3[%c1_18, %c0_19, %c0_20] : memref<4x128x128xbf16, #tpu.memory_space<vmem>>, vector<1x128x128xbf16>
    %29 = vector.shape_cast %28 : vector<1x128x128xbf16> to vector<128x128xbf16>
    %c1_21 = arith.constant 1 : index
    %c0_22 = arith.constant 0 : index
    %c0_23 = arith.constant 0 : index
    %30 = vector.load %arg4[%c1_21, %c0_22, %c0_23] : memref<4x128x128xbf16, #tpu.memory_space<vmem>>, vector<1x128x128xbf16>
    %31 = vector.shape_cast %30 : vector<1x128x128xbf16> to vector<128x128xbf16>
    %cst_24 = arith.constant dense<0.000000e+00> : vector<128x128xf32>
    %32 = tpu.matmul %27, %29, %cst_24 {dimension_numbers = #tpu.dot_dimension_numbers<[1], [1], [0], [0], [0, 0, 1, 0], [], []>} : vector<128x128xbf16>, vector<128x128xbf16>, vector<128x128xf32> -> vector<128x128xf32>
    %33 = vector.broadcast %1 : f32 to vector<128x128xf32>
    %34 = arith.mulf %32, %33 : vector<128x128xf32>
    %cst_25 = arith.constant dense<0xFF800000> : vector<128xf32>
    %35 = vector.multi_reduction <maximumf>, %34, %cst_25 [1] : vector<128x128xf32> to vector<128xf32>
    %36 = vector.shape_cast %35 : vector<128xf32> to vector<128x1xf32>
    %37 = vector.broadcast %36 : vector<128x1xf32> to vector<128x128xf32>
    %38 = arith.subf %34, %37 : vector<128x128xf32>
    %39 = math.exp %38 : vector<128x128xf32>
    %cst_26 = arith.constant dense<0.000000e+00> : vector<128xf32>
    %40 = vector.multi_reduction <add>, %39, %cst_26 [1] : vector<128x128xf32> to vector<128xf32>
    %41 = vector.shape_cast %40 : vector<128xf32> to vector<128x1xf32>
    %42 = tpu.reciprocal %41 : vector<128x1xf32> -> vector<128x1xf32>
    %43 = vector.broadcast %42 : vector<128x1xf32> to vector<128x128xf32>
    %44 = arith.mulf %39, %43 : vector<128x128xf32>
    %45 = arith.truncf %44 : vector<128x128xf32> to vector<128x128xbf16>
    %cst_27 = arith.constant dense<0.000000e+00> : vector<128x128xf32>
    %46 = tpu.matmul %45, %31, %cst_27 {dimension_numbers = #tpu.dot_dimension_numbers<[1], [0], [0], [1], [0, 0, 1, 1], [], []>} : vector<128x128xbf16>, vector<128x128xbf16>, vector<128x128xf32> -> vector<128x128xf32>
    %c1_28 = arith.constant 1 : index
    %c0_29 = arith.constant 0 : index
    %c0_30 = arith.constant 0 : index
    %47 = vector.load %arg5[%c1_28, %c0_29, %c0_30] : memref<4x128x128xf32, #tpu.memory_space<vmem>>, vector<1x128x128xf32>
    %48 = vector.shape_cast %47 : vector<1x128x128xf32> to vector<128x128xf32>
    %49 = vector.shape_cast %46 : vector<128x128xf32> to vector<1x128x128xf32>
    tpu.vector_store %arg5[%c1_28, %c0_29, %c0_30], %49 {strides = array<i32>} : memref<4x128x128xf32, #tpu.memory_space<vmem>>, vector<1x128x128xf32>,
    %c2 = arith.constant 2 : index
    %c0_31 = arith.constant 0 : index
    %c0_32 = arith.constant 0 : index
    %50 = vector.load %arg2[%c2, %c0_31, %c0_32] : memref<4x128x128xbf16, #tpu.memory_space<vmem>>, vector<1x128x128xbf16>
    %51 = vector.shape_cast %50 : vector<1x128x128xbf16> to vector<128x128xbf16>
    %c2_33 = arith.constant 2 : index
    %c0_34 = arith.constant 0 : index
    %c0_35 = arith.constant 0 : index
    %52 = vector.load %arg3[%c2_33, %c0_34, %c0_35] : memref<4x128x128xbf16, #tpu.memory_space<vmem>>, vector<1x128x128xbf16>
    %53 = vector.shape_cast %52 : vector<1x128x128xbf16> to vector<128x128xbf16>
    %c2_36 = arith.constant 2 : index
    %c0_37 = arith.constant 0 : index
    %c0_38 = arith.constant 0 : index
    %54 = vector.load %arg4[%c2_36, %c0_37, %c0_38] : memref<4x128x128xbf16, #tpu.memory_space<vmem>>, vector<1x128x128xbf16>
    %55 = vector.shape_cast %54 : vector<1x128x128xbf16> to vector<128x128xbf16>
    %cst_39 = arith.constant dense<0.000000e+00> : vector<128x128xf32>
    %56 = tpu.matmul %51, %53, %cst_39 {dimension_numbers = #tpu.dot_dimension_numbers<[1], [1], [0], [0], [0, 0, 1, 0], [], []>} : vector<128x128xbf16>, vector<128x128xbf16>, vector<128x128xf32> -> vector<128x128xf32>
    %57 = vector.broadcast %1 : f32 to vector<128x128xf32>
    %58 = arith.mulf %56, %57 : vector<128x128xf32>
    %cst_40 = arith.constant dense<0xFF800000> : vector<128xf32>
    %59 = vector.multi_reduction <maximumf>, %58, %cst_40 [1] : vector<128x128xf32> to vector<128xf32>
    %60 = vector.shape_cast %59 : vector<128xf32> to vector<128x1xf32>
    %61 = vector.broadcast %60 : vector<128x1xf32> to vector<128x128xf32>
    %62 = arith.subf %58, %61 : vector<128x128xf32>
    %63 = math.exp %62 : vector<128x128xf32>
    %cst_41 = arith.constant dense<0.000000e+00> : vector<128xf32>
    %64 = vector.multi_reduction <add>, %63, %cst_41 [1] : vector<128x128xf32> to vector<128xf32>
    %65 = vector.shape_cast %64 : vector<128xf32> to vector<128x1xf32>
    %66 = tpu.reciprocal %65 : vector<128x1xf32> -> vector<128x1xf32>
    %67 = vector.broadcast %66 : vector<128x1xf32> to vector<128x128xf32>
    %68 = arith.mulf %63, %67 : vector<128x128xf32>
    %69 = arith.truncf %68 : vector<128x128xf32> to vector<128x128xbf16>
    %cst_42 = arith.constant dense<0.000000e+00> : vector<128x128xf32>
    %70 = tpu.matmul %69, %55, %cst_42 {dimension_numbers = #tpu.dot_dimension_numbers<[1], [0], [0], [1], [0, 0, 1, 1], [], []>} : vector<128x128xbf16>, vector<128x128xbf16>, vector<128x128xf32> -> vector<128x128xf32>
    %c2_43 = arith.constant 2 : index
    %c0_44 = arith.constant 0 : index
    %c0_45 = arith.constant 0 : index
    %71 = vector.load %arg5[%c2_43, %c0_44, %c0_45] : memref<4x128x128xf32, #tpu.memory_space<vmem>>, vector<1x128x128xf32>
    %72 = vector.shape_cast %71 : vector<1x128x128xf32> to vector<128x128xf32>
    %73 = vector.shape_cast %70 : vector<128x128xf32> to vector<1x128x128xf32>
    tpu.vector_store %arg5[%c2_43, %c0_44, %c0_45], %73 {strides = array<i32>} : memref<4x128x128xf32, #tpu.memory_space<vmem>>, vector<1x128x128xf32>,
    %c3 = arith.constant 3 : index
    %c0_46 = arith.constant 0 : index
    %c0_47 = arith.constant 0 : index
    %74 = vector.load %arg2[%c3, %c0_46, %c0_47] : memref<4x128x128xbf16, #tpu.memory_space<vmem>>, vector<1x128x128xbf16>
    %75 = vector.shape_cast %74 : vector<1x128x128xbf16> to vector<128x128xbf16>
    %c3_48 = arith.constant 3 : index
    %c0_49 = arith.constant 0 : index
    %c0_50 = arith.constant 0 : index
    %76 = vector.load %arg3[%c3_48, %c0_49, %c0_50] : memref<4x128x128xbf16, #tpu.memory_space<vmem>>, vector<1x128x128xbf16>
    %77 = vector.shape_cast %76 : vector<1x128x128xbf16> to vector<128x128xbf16>
    %c3_51 = arith.constant 3 : index
    %c0_52 = arith.constant 0 : index
    %c0_53 = arith.constant 0 : index
    %78 = vector.load %arg4[%c3_51, %c0_52, %c0_53] : memref<4x128x128xbf16, #tpu.memory_space<vmem>>, vector<1x128x128xbf16>
    %79 = vector.shape_cast %78 : vector<1x128x128xbf16> to vector<128x128xbf16>
    %cst_54 = arith.constant dense<0.000000e+00> : vector<128x128xf32>
    %80 = tpu.matmul %75, %77, %cst_54 {dimension_numbers = #tpu.dot_dimension_numbers<[1], [1], [0], [0], [0, 0, 1, 0], [], []>} : vector<128x128xbf16>, vector<128x128xbf16>, vector<128x128xf32> -> vector<128x128xf32>
    %81 = vector.broadcast %1 : f32 to vector<128x128xf32>
    %82 = arith.mulf %80, %81 : vector<128x128xf32>
    %cst_55 = arith.constant dense<0xFF800000> : vector<128xf32>
    %83 = vector.multi_reduction <maximumf>, %82, %cst_55 [1] : vector<128x128xf32> to vector<128xf32>
    %84 = vector.shape_cast %83 : vector<128xf32> to vector<128x1xf32>
    %85 = vector.broadcast %84 : vector<128x1xf32> to vector<128x128xf32>
    %86 = arith.subf %82, %85 : vector<128x128xf32>
    %87 = math.exp %86 : vector<128x128xf32>
    %cst_56 = arith.constant dense<0.000000e+00> : vector<128xf32>
    %88 = vector.multi_reduction <add>, %87, %cst_56 [1] : vector<128x128xf32> to vector<128xf32>
    %89 = vector.shape_cast %88 : vector<128xf32> to vector<128x1xf32>
    %90 = tpu.reciprocal %89 : vector<128x1xf32> -> vector<128x1xf32>
    %91 = vector.broadcast %90 : vector<128x1xf32> to vector<128x128xf32>
    %92 = arith.mulf %87, %91 : vector<128x128xf32>
    %93 = arith.truncf %92 : vector<128x128xf32> to vector<128x128xbf16>
    %cst_57 = arith.constant dense<0.000000e+00> : vector<128x128xf32>
    %94 = tpu.matmul %93, %79, %cst_57 {dimension_numbers = #tpu.dot_dimension_numbers<[1], [0], [0], [1], [0, 0, 1, 1], [], []>} : vector<128x128xbf16>, vector<128x128xbf16>, vector<128x128xf32> -> vector<128x128xf32>
    %c3_58 = arith.constant 3 : index
    %c0_59 = arith.constant 0 : index
    %c0_60 = arith.constant 0 : index
    %95 = vector.load %arg5[%c3_58, %c0_59, %c0_60] : memref<4x128x128xf32, #tpu.memory_space<vmem>>, vector<1x128x128xf32>
    %96 = vector.shape_cast %95 : vector<1x128x128xf32> to vector<128x128xf32>
    %97 = vector.shape_cast %94 : vector<128x128xf32> to vector<1x128x128xf32>
    tpu.vector_store %arg5[%c3_58, %c0_59, %c0_60], %97 {strides = array<i32>} : memref<4x128x128xf32, #tpu.memory_space<vmem>>, vector<1x128x128xf32>,
    return
  }
  func.func @transform_0(%arg0: i32, %arg1: memref<1xf32, #tpu.memory_space<smem>>) -> (i32, i32, i32) {
    %c0_i32 = arith.constant 0 : i32
    %c0_i32_0 = arith.constant 0 : i32
    %c0_i32_1 = arith.constant 0 : i32
    return %arg0, %c0_i32, %c0_i32_0 : i32, i32, i32
  }
  func.func @transform_1(%arg0: i32, %arg1: memref<1xf32, #tpu.memory_space<smem>>) -> (i32, i32, i32) {
    %c0_i32 = arith.constant 0 : i32
    %c0_i32_0 = arith.constant 0 : i32
    %c0_i32_1 = arith.constant 0 : i32
    return %arg0, %c0_i32, %c0_i32_0 : i32, i32, i32
  }
  func.func @transform_2(%arg0: i32, %arg1: memref<1xf32, #tpu.memory_space<smem>>) -> (i32, i32, i32) {
    %c0_i32 = arith.constant 0 : i32
    %c0_i32_0 = arith.constant 0 : i32
    %c0_i32_1 = arith.constant 0 : i32
    return %arg0, %c0_i32, %c0_i32_0 : i32, i32, i32
  }
  func.func @transform_3(%arg0: i32, %arg1: memref<1xf32, #tpu.memory_space<smem>>) -> (i32, i32, i32) {
    %c0_i32 = arith.constant 0 : i32
    %c0_i32_0 = arith.constant 0 : i32
    %c0_i32_1 = arith.constant 0 : i32
    return %arg0, %c0_i32, %c0_i32_0 : i32, i32, i32
  }
}

</mosaic_0001>

<llo_original>
// kernel: tpu_custom_call.1
$region0: #{tpu_custom_call.1}
  #allocation0 [shape = 'u32[]', space=smem, size = 0x4, offset = 0x4, fixed_abs, tag = 'smem constant byte address 0x4 - core index']
  #allocation1 [shape = 'u32[144,128]{1,0:T(1,128)}', space=vmem, size = 0x12000, scoped, tag = 'internal scratch']
  #allocation2 [shape = 's32[1]{0}', space=sflag, size = 0x4, scoped, tag = 'scoped memory for tpu_custom_call.1']
  #allocation3 [shape = 'f32[1]{0:T(128)S(6)}', space=smem, size = 0x200, scoped, tag = 'prefetched SMEM operand 0']
  %s0 = inlined_call_operand.<no memory space> [shape: f32[1], index: 0, kind: input, shape index: {}]
  %s1 = inlined_call_operand.hbm [shape: bf16[8,128,128], index: 1, kind: input, shape index: {}]
  %s2 = inlined_call_operand.hbm [shape: bf16[8,128,128], index: 2, kind: input, shape index: {}]
  %s3 = inlined_call_operand.hbm [shape: bf16[8,128,128], index: 3, kind: input, shape index: {}]
  %s4 = inlined_call_operand.hbm [shape: f32[8,128,128], index: 4, kind: output, shape index: {}]
  %s5 = sld [smem:[#allocation0]]
  $region57: #{tpu_custom_call.1} parent=0
    _
  %s7 = ssub.s32 1, %s5
  %s8 = scalar_select 0, %s7, %s5
  %9 = sst [smem:[#allocation3]] %s0
  $region1: #{tpu_custom_call.1} parent=0
    #allocation4 [shape = 'u8[262144]{0}', space=vmem, size = 0x40000, scoped, tag = 'input window, operand 1']
    #allocation5 [shape = 's32[2]{0}', space=sflag, size = 0x8, scoped, tag = 'scoped memory for tpu_custom_call.1']
    #allocation6 [shape = 's32[2]{0}', space=sflag, size = 0x8, scoped, tag = 'scoped memory for tpu_custom_call.1']
    #allocation7 [shape = 'u8[262144]{0}', space=vmem, size = 0x40000, scoped, tag = 'input window, operand 2']
    #allocation8 [shape = 's32[2]{0}', space=sflag, size = 0x8, scoped, tag = 'scoped memory for tpu_custom_call.1']
    #allocation9 [shape = 'u8[262144]{0}', space=vmem, size = 0x40000, scoped, tag = 'input window, operand 3']
    #allocation10 [shape = 'u8[524288]{0}', space=vmem, size = 0x80000, scoped, tag = 'output window, operand 0']
    %10 = vsyncpa [#allocation5], 0
    %s11 = scalar_lea.sflag [#allocation5], 1
    %12 = vsyncpa %s11, 0
    %13 = vsyncpa [#allocation8], 0
    %s14 = scalar_lea.sflag [#allocation8], 1
    %15 = vsyncpa %s14, 0
    %16 = vsyncpa [#allocation6], 0
    %s17 = scalar_lea.sflag [#allocation6], 1
    %18 = vsyncpa %s17, 0
    loop: start=0, step=1, limit=4
    $region2: #{tpu_custom_call.1} parent=1 // loop_pre_header
      _
    $region3: #{tpu_custom_call.1} parent=1 // loop_header
      %s20 = sphi 0, %s24
      %p21 = scmp.ge.s32.totalorder %s20, 4
      %s30 = sphi 0, %s32
      %s33 = sphi 0, %s30
      %s34 = sphi 0, %s33
      %s50 = sphi 0, %s34
      %s56 = sphi 0, %s58
      %s59 = sphi 0, %s56
      %s60 = sphi 0, %s59
      %s76 = sphi 0, %s60
      %s82 = sphi 0, %s84
      %s85 = sphi 0, %s82
      %s86 = sphi 0, %s85
      %s102 = sphi 0, %s86
      %s108 = sphi 0, %s110
      %s111 = sphi 0, %s108
      %s112 = sphi 0, %s111
      %s128 = sphi 0, %s112
    $region4: #{tpu_custom_call.1} parent=1 // loop_header_branch
      %23 = sbr.rel (%p21) target = $region8
    $region5: #{tpu_custom_call.1} parent=1 // loop_body
      %s25 = ssub.s32 %s20, 1
      %s26 = ssub.s32 %s20, 2
      %s27 = sadd.s32 %s20, 1
      %s28 = ssub.s32 %s20, %s27
      %p29 = scmp.eq.s32.totalorder %s28, 0
      %s31 = sadd.s32 %s30, 1
      %s32 = scalar_select %p29, %s30, %s31
      %p35 = pneg %p29
      %p36 = scmp.eq.s32.totalorder %s20, 1
      %p37 = por %p35, %p36
      %p38 = scmp.ne.s32.totalorder %s30, %s33
      %p39 = scmp.eq.s32.totalorder %s20, 0
      %p40 = por %p38, %p39
      %p41 = scmp.ne.s32.totalorder %s30, %s33
      %p42 = scmp.eq.s32.totalorder %s25, 1
      %p43 = por %p41, %p42
      %p44 = scmp.ne.s32.totalorder %s33, %s34
      %p45 = scmp.eq.s32.totalorder %s25, 0
      %p46 = por %p44, %p45
      %p47 = scmp.ne.s32.totalorder %s33, %s34
      %p48 = scmp.eq.s32.totalorder %s26, 1
      %p49 = por %p47, %p48
      %p51 = scmp.ne.s32.totalorder %s34, %s50
      %p52 = scmp.eq.s32.totalorder %s26, 0
      %p53 = por %p51, %p52
      %s54 = ssub.s32 %s20, %s27
      %p55 = scmp.eq.s32.totalorder %s54, 0
      %s57 = sadd.s32 %s56, 1
      %s58 = scalar_select %p55, %s56, %s57
      %p61 = pneg %p55
      %p62 = scmp.eq.s32.totalorder %s20, 1
      %p63 = por %p61, %p62
      %p64 = scmp.ne.s32.totalorder %s56, %s59
      %p65 = scmp.eq.s32.totalorder %s20, 0
      %p66 = por %p64, %p65
      %p67 = scmp.ne.s32.totalorder %s56, %s59
      %p68 = scmp.eq.s32.totalorder %s25, 1
      %p69 = por %p67, %p68
      %p70 = scmp.ne.s32.totalorder %s59, %s60
      %p71 = scmp.eq.s32.totalorder %s25, 0
      %p72 = por %p70, %p71
      %p73 = scmp.ne.s32.totalorder %s59, %s60
      %p74 = scmp.eq.s32.totalorder %s26, 1
      %p75 = por %p73, %p74
      %p77 = scmp.ne.s32.totalorder %s60, %s76
      %p78 = scmp.eq.s32.totalorder %s26, 0
      %p79 = por %p77, %p78
      %s80 = ssub.s32 %s20, %s27
      %p81 = scmp.eq.s32.totalorder %s80, 0
      %s83 = sadd.s32 %s82, 1
      %s84 = scalar_select %p81, %s82, %s83
      %p87 = pneg %p81
      %p88 = scmp.eq.s32.totalorder %s20, 1
      %p89 = por %p87, %p88
      %p90 = scmp.ne.s32.totalorder %s82, %s85
      %p91 = scmp.eq.s32.totalorder %s20, 0
      %p92 = por %p90, %p91
      %p93 = scmp.ne.s32.totalorder %s82, %s85
      %p94 = scmp.eq.s32.totalorder %s25, 1
      %p95 = por %p93, %p94
      %p96 = scmp.ne.s32.totalorder %s85, %s86
      %p97 = scmp.eq.s32.totalorder %s25, 0
      %p98 = por %p96, %p97
      %p99 = scmp.ne.s32.totalorder %s85, %s86
      %p100 = scmp.eq.s32.totalorder %s26, 1
      %p101 = por %p99, %p100
      %p103 = scmp.ne.s32.totalorder %s86, %s102
      %p104 = scmp.eq.s32.totalorder %s26, 0
      %p105 = por %p103, %p104
      %s106 = ssub.s32 %s20, %s27
      %p107 = scmp.eq.s32.totalorder %s106, 0
      %s109 = sadd.s32 %s108, 1
      %s110 = scalar_select %p107, %s108, %s109
      %p113 = pneg %p107
      %p114 = scmp.eq.s32.totalorder %s20, 1
      %p115 = por %p113, %p114
      %p116 = scmp.ne.s32.totalorder %s108, %s111
      %p117 = scmp.eq.s32.totalorder %s20, 0
      %p118 = por %p116, %p117
      %p119 = scmp.ne.s32.totalorder %s108, %s111
      %p120 = scmp.eq.s32.totalorder %s25, 1
      %p121 = por %p119, %p120
      %p122 = scmp.ne.s32.totalorder %s111, %s112
      %p123 = scmp.eq.s32.totalorder %s25, 0
      %p124 = por %p122, %p123
      %p125 = scmp.ne.s32.totalorder %s111, %s112
      %p126 = scmp.eq.s32.totalorder %s26, 1
      %p127 = por %p125, %p126
      %p129 = scmp.ne.s32.totalorder %s112, %s128
      %p130 = scmp.eq.s32.totalorder %s26, 0
      %p131 = por %p129, %p130
      %p132 = scmp.le.s32.totalorder 1, %s20
      %p133 = scmp.lt.s32.totalorder %s20, 3
      %p134 = pnand %p132, %p133
      %p135 = pneg %p134
      // Predicated region
      $region9: #{tpu_custom_call.1} parent=5 // pred_check
        _
      $region10: #{tpu_custom_call.1} parent=5 // pred_check_branch
        %137 = sbr.rel (%p134) target = $region12
      $region11: #{tpu_custom_call.1} parent=5 // pred_region
        %s138 = ssub.s32 %s20, 1
      $region12: #{tpu_custom_call.1} parent=5 // pred_fallthru
        _
      %p139 = scmp.lt.s32.totalorder %s20, 2
      // Predicated region
      $region13: #{tpu_custom_call.1} parent=5 // pred_check
        %p140 = pneg %p139
      $region14: #{tpu_custom_call.1} parent=5 // pred_check_branch
        %142 = sbr.rel (%p140) target = $region16
      $region15: #{tpu_custom_call.1} parent=5 // pred_region
        // Predicated region
        $region17: #{tpu_custom_call.1} parent=15 // pred_check
          %p143 = pneg %p40
        $region18: #{tpu_custom_call.1} parent=15 // pred_check_branch
          %145 = sbr.rel (%p143) target = $region20
        $region19: #{tpu_custom_call.1} parent=15 // pred_region
          %s146 = sand.u32 %s30, 1
          %s147 = scalar_lea.sflag [#allocation5], %s146
          %s148 = sand.u32 %s30, 1
          %s149 = smul.addr %s148, 256
          %s150 = scalar_lea.vmem [#allocation4], %s149
          %s151 = smul.u32 4, %s20
          %s153 = ssub.s32 4096, 4096
          %154 = vsyncadd %s147, %s153
          %s155 = smul.addr %s151, 16
          %s156 = smul.addr %s155, 64
          %s157 = scalar_lea.hbm %s1, %s156
          %s158 = sshll.u32 %s150, 4
          %s159 = int_to_ptr.vmem [resolvable:$true] %s158
          %164 = dma.hbm_to_vmem [thread:$0]  %s157, 4096, %s159, %s147, 64, 64, 4
        $region20: #{tpu_custom_call.1} parent=15 // pred_fallthru
          _
        // Predicated region
        $region21: #{tpu_custom_call.1} parent=15 // pred_check
          %p165 = pneg %p66
        $region22: #{tpu_custom_call.1} parent=15 // pred_check_branch
          %167 = sbr.rel (%p165) target = $region24
        $region23: #{tpu_custom_call.1} parent=15 // pred_region
          %s168 = sand.u32 %s20, 1
          %s169 = scalar_lea.sflag [#allocation8], %s168
          %s170 = sand.u32 %s56, 1
          %s171 = smul.addr %s170, 256
          %s172 = scalar_lea.vmem [#allocation7], %s171
          %s173 = smul.u32 4, %s20
          %s175 = ssub.s32 4096, 4096
          %176 = vsyncadd %s169, %s175
          %s177 = smul.addr %s173, 16
          %s178 = smul.addr %s177, 64
          %s179 = scalar_lea.hbm %s2, %s178
          %s180 = sshll.u32 %s172, 4
          %s181 = int_to_ptr.vmem [resolvable:$true] %s180
          %186 = dma.hbm_to_vmem [thread:$0]  %s179, 4096, %s181, %s169, 64, 64, 4
        $region24: #{tpu_custom_call.1} parent=15 // pred_fallthru
          _
        // Predicated region
        $region25: #{tpu_custom_call.1} parent=15 // pred_check
          %p187 = pneg %p92
        $region26: #{tpu_custom_call.1} parent=15 // pred_check_branch
          %189 = sbr.rel (%p187) target = $region28
        $region27: #{tpu_custom_call.1} parent=15 // pred_region
          %s190 = sand.u32 %s20, 1
          %s191 = scalar_lea.sflag [#allocation8], %s190
          %s192 = sand.u32 %s82, 1
          %s193 = smul.addr %s192, 256
          %s194 = scalar_lea.vmem [#allocation9], %s193
          %s195 = smul.u32 4, %s20
          %s197 = ssub.s32 4096, 4096
          %198 = vsyncadd %s191, %s197
          %s199 = smul.addr %s195, 16
          %s200 = smul.addr %s199, 64
          %s201 = scalar_lea.hbm %s3, %s200
          %s202 = sshll.u32 %s194, 4
          %s203 = int_to_ptr.vmem [resolvable:$true] %s202
          %208 = dma.hbm_to_vmem [thread:$0]  %s201, 4096, %s203, %s191, 64, 64, 4
        $region28: #{tpu_custom_call.1} parent=15 // pred_fallthru
          _
      $region16: #{tpu_custom_call.1} parent=5 // pred_fallthru
        _
      %p209 = scmp.le.s32.totalorder 1, %s20
      %p210 = scmp.lt.s32.totalorder %s20, 3
      %p211 = pnand %p209, %p210
      %p212 = pneg %p211
      // Predicated region
      $region29: #{tpu_custom_call.1} parent=5 // pred_check
        _
      $region30: #{tpu_custom_call.1} parent=5 // pred_check_branch
        %214 = sbr.rel (%p211) target = $region32
      $region31: #{tpu_custom_call.1} parent=5 // pred_region
        %s215 = ssub.s32 %s20, 1
        %s216 = sand.u32 %s33, 1
        %s217 = scalar_lea.sflag [#allocation5], %s216
        %s218 = sand.u32 %s33, 1
        %s219 = smul.addr %s218, 256
        %s220 = scalar_lea.vmem [#allocation4], %s219
        // Predicated region
        $region33: #{tpu_custom_call.1} parent=31 // pred_check
          %p221 = pneg %p46
        $region34: #{tpu_custom_call.1} parent=31 // pred_check_branch
          %223 = sbr.rel (%p221) target = $region36
        $region35: #{tpu_custom_call.1} parent=31 // pred_region
          %224 = dma.done %s217, 4096
        $region36: #{tpu_custom_call.1} parent=31 // pred_fallthru
          _
        %s225 = sand.u32 %s25, 1
        %s226 = scalar_lea.sflag [#allocation8], %s225
        %s227 = sand.u32 %s59, 1
        %s228 = smul.addr %s227, 256
        %s229 = scalar_lea.vmem [#allocation7], %s228
        // Predicated region
        $region37: #{tpu_custom_call.1} parent=31 // pred_check
          %p230 = pneg %p72
        $region38: #{tpu_custom_call.1} parent=31 // pred_check_branch
          %232 = sbr.rel (%p230) target = $region40
        $region39: #{tpu_custom_call.1} parent=31 // pred_region
          %233 = dma.done %s226, 4096
        $region40: #{tpu_custom_call.1} parent=31 // pred_fallthru
          _
        %s234 = sand.u32 %s25, 1
        %s235 = scalar_lea.sflag [#allocation8], %s234
        %s236 = sand.u32 %s85, 1
        %s237 = smul.addr %s236, 256
        %s238 = scalar_lea.vmem [#allocation9], %s237
        // Predicated region
        $region41: #{tpu_custom_call.1} parent=31 // pred_check
          %p239 = pneg %p98
        $region42: #{tpu_custom_call.1} parent=31 // pred_check_branch
          %241 = sbr.rel (%p239) target = $region44
        $region43: #{tpu_custom_call.1} parent=31 // pred_region
          %242 = dma.done %s235, 4096
        $region44: #{tpu_custom_call.1} parent=31 // pred_fallthru
          _
        %s243 = sand.u32 %s33, 1
        %s244 = scalar_lea.sflag [#allocation5], %s243
        %s245 = sand.u32 %s33, 1
        %s246 = smul.addr %s245, 256
        %s247 = scalar_lea.vmem [#allocation4], %s246
        %p248 = pneg %p46
        %p249 = pneg %p43
        %s250 = sand.u32 %s25, 1
        %s251 = scalar_lea.sflag [#allocation8], %s250
        %s252 = sand.u32 %s59, 1
        %s253 = smul.addr %s252, 256
        %s254 = scalar_lea.vmem [#allocation7], %s253
        %p255 = pneg %p72
        %p256 = pneg %p69
        %s257 = sand.u32 %s25, 1
        %s258 = scalar_lea.sflag [#allocation8], %s257
        %s259 = sand.u32 %s85, 1
        %s260 = smul.addr %s259, 256
        %s261 = scalar_lea.vmem [#allocation9], %s260
        %p262 = pneg %p98
        %p263 = pneg %p95
        %p264 = pneg %p124
        %p265 = pneg %p121
        %s266 = sand.u32 %s111, 1
        %s267 = scalar_lea.sflag [#allocation6], %s266
        %s268 = sand.u32 %s111, 1
        %s269 = smul.addr %s268, 512
        %s270 = scalar_lea.vmem [#allocation10], %s269
        %s271 = smul.u32 4, %s25
        %s272 = smul.u32 4, %s25
        %s273 = smul.u32 4, %s25
        %s274 = smul.u32 4, %s25
        %s276 = sld [smem:[#allocation3]]
        %v277 = vstv %s276
        %v278 = vrcp.pop %v277
        %s279 = vtos %v278
        %v280 = vld [vmem:[%s220] sm:$0xf]
        %v281 = vld [vmem:[%s220 + $0x4] sm:$0xf]
        %v282 = vld [vmem:[%s220 + $0x8] sm:$0xf]
        %v283 = vld [vmem:[%s220 + $0xc] sm:$0xf]
        %v284 = vld [vmem:[%s220 + $0x10] sm:$0xf]
        %v285 = vld [vmem:[%s220 + $0x14] sm:$0xf]
        %v286 = vld [vmem:[%s220 + $0x18] sm:$0xf]
        %v287 = vld [vmem:[%s220 + $0x1c] sm:$0xf]
        %v288 = vld [vmem:[%s220 + $0x20] sm:$0xf]
        %v289 = vld [vmem:[%s220 + $0x24] sm:$0xf]
        %v290 = vld [vmem:[%s220 + $0x28] sm:$0xf]
        %v291 = vld [vmem:[%s220 + $0x2c] sm:$0xf]
        %v292 = vld [vmem:[%s220 + $0x30] sm:$0xf]
        %v293 = vld [vmem:[%s220 + $0x34] sm:$0xf]
        %v294 = vld [vmem:[%s220 + $0x38] sm:$0xf]
        %v295 = vld [vmem:[%s220 + $0x3c] sm:$0xf]
        %v296 = vld [vmem:[%s229] sm:$0xf]
        %v297 = vld [vmem:[%s229 + $0x4] sm:$0xf]
        %v298 = vld [vmem:[%s229 + $0x8] sm:$0xf]
        %v299 = vld [vmem:[%s229 + $0xc] sm:$0xf]
        %v300 = vld [vmem:[%s229 + $0x10] sm:$0xf]
        %v301 = vld [vmem:[%s229 + $0x14] sm:$0xf]
        %v302 = vld [vmem:[%s229 + $0x18] sm:$0xf]
        %v303 = vld [vmem:[%s229 + $0x1c] sm:$0xf]
        %v304 = vld [vmem:[%s229 + $0x20] sm:$0xf]
        %v305 = vld [vmem:[%s229 + $0x24] sm:$0xf]
        %v306 = vld [vmem:[%s229 + $0x28] sm:$0xf]
        %v307 = vld [vmem:[%s229 + $0x2c] sm:$0xf]
        %v308 = vld [vmem:[%s229 + $0x30] sm:$0xf]
        %v309 = vld [vmem:[%s229 + $0x34] sm:$0xf]
        %v310 = vld [vmem:[%s229 + $0x38] sm:$0xf]
        %v311 = vld [vmem:[%s229 + $0x3c] sm:$0xf]
        %v312 = vld [vmem:[%s238] sm:$0xf]
        %v313 = vld [vmem:[%s238 + $0x4] sm:$0xf]
        %v314 = vld [vmem:[%s238 + $0x8] sm:$0xf]
        %v315 = vld [vmem:[%s238 + $0xc] sm:$0xf]
        %v316 = vld [vmem:[%s238 + $0x10] sm:$0xf]
        %v317 = vld [vmem:[%s238 + $0x14] sm:$0xf]
        %v318 = vld [vmem:[%s238 + $0x18] sm:$0xf]
        %v319 = vld [vmem:[%s238 + $0x1c] sm:$0xf]
        %v320 = vld [vmem:[%s238 + $0x20] sm:$0xf]
        %v321 = vld [vmem:[%s238 + $0x24] sm:$0xf]
        %v322 = vld [vmem:[%s238 + $0x28] sm:$0xf]
        %v323 = vld [vmem:[%s238 + $0x2c] sm:$0xf]
        %v324 = vld [vmem:[%s238 + $0x30] sm:$0xf]
        %v325 = vld [vmem:[%s238 + $0x34] sm:$0xf]
        %v326 = vld [vmem:[%s238 + $0x38] sm:$0xf]
        %v327 = vld [vmem:[%s238 + $0x3c] sm:$0xf]
        %v344 = vunpack.c.l.b16 %v280
        %v345 = vunpack.c.l.b16 %v281
        %v346 = vunpack.c.l.b16 %v282
        %v347 = vunpack.c.l.b16 %v283
        %v348 = vunpack.c.l.b16 %v284
        %v349 = vunpack.c.l.b16 %v285
        %v350 = vunpack.c.l.b16 %v286
        %v351 = vunpack.c.l.b16 %v287
        %v352 = vunpack.c.l.b16 %v288
        %v353 = vunpack.c.l.b16 %v289
        %v354 = vunpack.c.l.b16 %v290
        %v355 = vunpack.c.l.b16 %v291
        %v356 = vunpack.c.l.b16 %v292
        %v357 = vunpack.c.l.b16 %v293
        %v358 = vunpack.c.l.b16 %v294
        %v359 = vunpack.c.l.b16 %v295
        %v360 = vpack.c.b16 %v345, %v344
        %v361 = vpack.c.b16 %v347, %v346
        %v362 = vpack.c.b16 %v349, %v348
        %v363 = vpack.c.b16 %v351, %v350
        %v364 = vpack.c.b16 %v353, %v352
        %v365 = vpack.c.b16 %v355, %v354
        %v366 = vpack.c.b16 %v357, %v356
        %v367 = vpack.c.b16 %v359, %v358
        %v392 = vunpack.c.l.b16 %v296
        %v393 = vunpack.c.l.b16 %v297
        %v394 = vunpack.c.l.b16 %v298
        %v395 = vunpack.c.l.b16 %v299
        %v396 = vunpack.c.l.b16 %v300
        %v397 = vunpack.c.l.b16 %v301
        %v398 = vunpack.c.l.b16 %v302
        %v399 = vunpack.c.l.b16 %v303
        %v400 = vunpack.c.l.b16 %v304
        %v401 = vunpack.c.l.b16 %v305
        %v402 = vunpack.c.l.b16 %v306
        %v403 = vunpack.c.l.b16 %v307
        %v404 = vunpack.c.l.b16 %v308
        %v405 = vunpack.c.l.b16 %v309
        %v406 = vunpack.c.l.b16 %v310
        %v407 = vunpack.c.l.b16 %v311
        %v408 = vpack.c.b16 %v393, %v392
        %v409 = vpack.c.b16 %v395, %v394
        %v410 = vpack.c.b16 %v397, %v396
        %v411 = vpack.c.b16 %v399, %v398
        %v412 = vpack.c.b16 %v401, %v400
        %v413 = vpack.c.b16 %v403, %v402
        %v414 = vpack.c.b16 %v405, %v404
        %v415 = vpack.c.b16 %v407, %v406
        %424 = vmatprep.subr.bf16.mxu0 0
        %425 = vmatpush1.bf16.xpose.msra.mxu0 %v415
        %426 = vmatprep.subr.bf16.mxu0 0
        %427 = vmatpush1.bf16.xpose.msra.mxu0 %v414
        %428 = vmatprep.subr.bf16.mxu0 0
        %429 = vmatpush1.bf16.xpose.msra.mxu0 %v413
        %430 = vmatprep.subr.bf16.mxu0 0
        %431 = vmatpush1.bf16.xpose.msra.mxu0 %v412
        %432 = vmatprep.subr.bf16.mxu0 0
        %433 = vmatpush1.bf16.xpose.msra.mxu0 %v411
        %434 = vmatprep.subr.bf16.mxu0 0
        %435 = vmatpush1.bf16.xpose.msra.mxu0 %v410
        %436 = vmatprep.subr.bf16.mxu0 0
        %437 = vmatpush1.bf16.xpose.msra.mxu0 %v409
        %438 = vmatprep.subr.bf16.mxu0 0
        %439 = vmatpush1.bf16.xpose.msra.mxu0 %v408
        %440 = vmatprep.subr.bf16.mxu0 0
        %441 = vmatpush2.bf16.xpose.msra.mxu0 0
        %442 = vmatprep.subr.bf16.mxu0 0
        %443 = vmatpush2.bf16.xpose.msra.mxu0 0
        %444 = vmatprep.subr.bf16.mxu0 0
        %445 = vmatpush2.bf16.xpose.msra.mxu0 0
        %446 = vmatprep.subr.bf16.mxu0 0
        %447 = vmatpush2.bf16.xpose.msra.mxu0 0
        %448 = vmatprep.subr.bf16.mxu0 0
        %449 = vmatpush2.bf16.xpose.msra.mxu0 0
        %450 = vmatprep.subr.bf16.mxu0 0
        %451 = vmatpush2.bf16.xpose.msra.mxu0 0
        %452 = vmatprep.subr.bf16.mxu0 0
        %453 = vmatpush2.bf16.xpose.msra.mxu0 0
        %454 = vmatprep.subr.bf16.mxu0 0
        %455 = vmatpush2.bf16.xpose.msra.mxu0 0
        %456 = vmatprep.mubr.bf16.mxu0 0
        %457 = vmatmul.mubr.bf16.gmra.mxu0 %v360
        %v458 = vpop.f32.mrf.mxu0
        %v459 = vadd.f32 0.0, %v458
        %v460 = vpop.f32.mrf.mxu0
        %v461 = vpop.f32.mrf.mxu0
        %v462 = vadd.f32 0.0, %v461
        %v463 = vpop.f32.mrf.mxu0
        %464 = vmatprep.mubr.bf16.mxu0 0
        %465 = vmatmul.mubr.bf16.gmra.mxu0 %v361
        %v466 = vpop.f32.mrf.mxu0
        %v467 = vadd.f32 0.0, %v466
        %v468 = vpop.f32.mrf.mxu0
        %v469 = vpop.f32.mrf.mxu0
        %v470 = vadd.f32 0.0, %v469
        %v471 = vpop.f32.mrf.mxu0
        %472 = vmatprep.mubr.bf16.mxu0 0
        %473 = vmatmul.mubr.bf16.gmra.mxu0 %v362
        %v474 = vpop.f32.mrf.mxu0
        %v475 = vadd.f32 0.0, %v474
        %v476 = vpop.f32.mrf.mxu0
        %v477 = vpop.f32.mrf.mxu0
        %v478 = vadd.f32 0.0, %v477
        %v479 = vpop.f32.mrf.mxu0
        %480 = vmatprep.mubr.bf16.mxu0 0
        %481 = vmatmul.mubr.bf16.gmra.mxu0 %v363
        %v482 = vpop.f32.mrf.mxu0
        %v483 = vadd.f32 0.0, %v482
        %v484 = vpop.f32.mrf.mxu0
        %v485 = vpop.f32.mrf.mxu0
        %v486 = vadd.f32 0.0, %v485
        %v487 = vpop.f32.mrf.mxu0
        %488 = vmatprep.mubr.bf16.mxu0 0
        %489 = vmatmul.mubr.bf16.gmra.mxu0 %v364
        %v490 = vpop.f32.mrf.mxu0
        %v491 = vadd.f32 0.0, %v490
        %v492 = vpop.f32.mrf.mxu0
        %v493 = vpop.f32.mrf.mxu0
        %v494 = vadd.f32 0.0, %v493
        %v495 = vpop.f32.mrf.mxu0
        %496 = vmatprep.mubr.bf16.mxu0 0
        %497 = vmatmul.mubr.bf16.gmra.mxu0 %v365
        %v498 = vpop.f32.mrf.mxu0
        %v499 = vadd.f32 0.0, %v498
        %v500 = vpop.f32.mrf.mxu0
        %v501 = vpop.f32.mrf.mxu0
        %v502 = vadd.f32 0.0, %v501
        %v503 = vpop.f32.mrf.mxu0
        %504 = vmatprep.mubr.bf16.mxu0 0
        %505 = vmatmul.mubr.bf16.gmra.mxu0 %v366
        %v506 = vpop.f32.mrf.mxu0
        %v507 = vadd.f32 0.0, %v506
        %v508 = vpop.f32.mrf.mxu0
        %v509 = vpop.f32.mrf.mxu0
        %v510 = vadd.f32 0.0, %v509
        %v511 = vpop.f32.mrf.mxu0
        %512 = vmatprep.mubr.bf16.mxu0 0
        %513 = vmatmul.mubr.bf16.gmra.mxu0 %v367
        %v514 = vpop.f32.mrf.mxu0
        %v515 = vadd.f32 0.0, %v514
        %v516 = vpop.f32.mrf.mxu0
        %v517 = vpop.f32.mrf.mxu0
        %v518 = vadd.f32 0.0, %v517
        %v519 = vpop.f32.mrf.mxu0
        %520 = vdwg.mxu0
        %v521 = vstv %s279
        %v522 = vmul.f32 %v459, %v521
        %v523 = vmul.f32 %v462, %v521
        %v524 = vmul.f32 %v467, %v521
        %v525 = vmul.f32 %v470, %v521
        %v526 = vmul.f32 %v475, %v521
        %v527 = vmul.f32 %v478, %v521
        %v528 = vmul.f32 %v483, %v521
        %v529 = vmul.f32 %v486, %v521
        %v530 = vmul.f32 %v491, %v521
        %v531 = vmul.f32 %v494, %v521
        %v532 = vmul.f32 %v499, %v521
        %v533 = vmul.f32 %v502, %v521
        %v534 = vmul.f32 %v507, %v521
        %v535 = vmul.f32 %v510, %v521
        %v536 = vmul.f32 %v515, %v521
        %v537 = vmul.f32 %v518, %v521
        %538 = vmax.xlane.f32.xlu0 %v522
        %v539 = vpop.xlane.xlu0 %538
        %540 = vmax.xlane.f32.xlu0 %v523
        %v541 = vpop.xlane.xlu0 %540
        %542 = vmax.xlane.f32.xlu0 %v524
        %v543 = vpop.xlane.xlu0 %542
        %544 = vmax.xlane.f32.xlu0 %v525
        %v545 = vpop.xlane.xlu0 %544
        %546 = vmax.xlane.f32.xlu0 %v526
        %v547 = vpop.xlane.xlu0 %546
        %548 = vmax.xlane.f32.xlu0 %v527
        %v549 = vpop.xlane.xlu0 %548
        %550 = vmax.xlane.f32.xlu0 %v528
        %v551 = vpop.xlane.xlu0 %550
        %552 = vmax.xlane.f32.xlu0 %v529
        %v553 = vpop.xlane.xlu0 %552
        %554 = vmax.xlane.f32.xlu0 %v530
        %v555 = vpop.xlane.xlu0 %554
        %556 = vmax.xlane.f32.xlu0 %v531
        %v557 = vpop.xlane.xlu0 %556
        %558 = vmax.xlane.f32.xlu0 %v532
        %v559 = vpop.xlane.xlu0 %558
        %560 = vmax.xlane.f32.xlu0 %v533
        %v561 = vpop.xlane.xlu0 %560
        %562 = vmax.xlane.f32.xlu0 %v534
        %v563 = vpop.xlane.xlu0 %562
        %564 = vmax.xlane.f32.xlu0 %v535
        %v565 = vpop.xlane.xlu0 %564
        %566 = vmax.xlane.f32.xlu0 %v536
        %v567 = vpop.xlane.xlu0 %566
        %568 = vmax.xlane.f32.xlu0 %v537
        %v569 = vpop.xlane.xlu0 %568
        %v570 = vsub.f32 %v522, %v539
        %v571 = vsub.f32 %v523, %v541
        %v572 = vsub.f32 %v524, %v543
        %v573 = vsub.f32 %v525, %v545
        %v574 = vsub.f32 %v526, %v547
        %v575 = vsub.f32 %v527, %v549
        %v576 = vsub.f32 %v528, %v551
        %v577 = vsub.f32 %v529, %v553
        %v578 = vsub.f32 %v530, %v555
        %v579 = vsub.f32 %v531, %v557
        %v580 = vsub.f32 %v532, %v559
        %v581 = vsub.f32 %v533, %v561
        %v582 = vsub.f32 %v534, %v563
        %v583 = vsub.f32 %v535, %v565
        %v584 = vsub.f32 %v536, %v567
        %v585 = vsub.f32 %v537, %v569
        %v586 = vmul.f32 %v570, 1.442695
        %v587 = vpow.pop %v586
        %v588 = vmul.f32 %v571, 1.442695
        %v589 = vpow.pop %v588
        %v590 = vmul.f32 %v572, 1.442695
        %v591 = vpow.pop %v590
        %v592 = vmul.f32 %v573, 1.442695
        %v593 = vpow.pop %v592
        %v594 = vmul.f32 %v574, 1.442695
        %v595 = vpow.pop %v594
        %v596 = vmul.f32 %v575, 1.442695
        %v597 = vpow.pop %v596
        %v598 = vmul.f32 %v576, 1.442695
        %v599 = vpow.pop %v598
        %v600 = vmul.f32 %v577, 1.442695
        %v601 = vpow.pop %v600
        %v602 = vmul.f32 %v578, 1.442695
        %v603 = vpow.pop %v602
        %v604 = vmul.f32 %v579, 1.442695
        %v605 = vpow.pop %v604
        %v606 = vmul.f32 %v580, 1.442695
        %v607 = vpow.pop %v606
        %v608 = vmul.f32 %v581, 1.442695
        %v609 = vpow.pop %v608
        %v610 = vmul.f32 %v582, 1.442695
        %v611 = vpow.pop %v610
        %v612 = vmul.f32 %v583, 1.442695
        %v613 = vpow.pop %v612
        %v614 = vmul.f32 %v584, 1.442695
        %v615 = vpow.pop %v614
        %v616 = vmul.f32 %v585, 1.442695
        %v617 = vpow.pop %v616
        %618 = vadd.xlane.f32.xlu0 %v587
        %v619 = vpop.xlane.xlu0 %618
        %620 = vadd.xlane.f32.xlu0 %v589
        %v621 = vpop.xlane.xlu0 %620
        %622 = vadd.xlane.f32.xlu0 %v591
        %v623 = vpop.xlane.xlu0 %622
        %624 = vadd.xlane.f32.xlu0 %v593
        %v625 = vpop.xlane.xlu0 %624
        %626 = vadd.xlane.f32.xlu0 %v595
        %v627 = vpop.xlane.xlu0 %626
        %628 = vadd.xlane.f32.xlu0 %v597
        %v629 = vpop.xlane.xlu0 %628
        %630 = vadd.xlane.f32.xlu0 %v599
        %v631 = vpop.xlane.xlu0 %630
        %632 = vadd.xlane.f32.xlu0 %v601
        %v633 = vpop.xlane.xlu0 %632
        %634 = vadd.xlane.f32.xlu0 %v603
        %v635 = vpop.xlane.xlu0 %634
        %636 = vadd.xlane.f32.xlu0 %v605
        %v637 = vpop.xlane.xlu0 %636
        %638 = vadd.xlane.f32.xlu0 %v607
        %v639 = vpop.xlane.xlu0 %638
        %640 = vadd.xlane.f32.xlu0 %v609
        %v641 = vpop.xlane.xlu0 %640
        %642 = vadd.xlane.f32.xlu0 %v611
        %v643 = vpop.xlane.xlu0 %642
        %644 = vadd.xlane.f32.xlu0 %v613
        %v645 = vpop.xlane.xlu0 %644
        %646 = vadd.xlane.f32.xlu0 %v615
        %v647 = vpop.xlane.xlu0 %646
        %648 = vadd.xlane.f32.xlu0 %v617
        %v649 = vpop.xlane.xlu0 %648
        %v650 = vrcp.pop %v619
        %v651 = vrcp.pop %v621
        %v652 = vrcp.pop %v623
        %v653 = vrcp.pop %v625
        %v654 = vrcp.pop %v627
        %v655 = vrcp.pop %v629
        %v656 = vrcp.pop %v631
        %v657 = vrcp.pop %v633
        %v658 = vrcp.pop %v635
        %v659 = vrcp.pop %v637
        %v660 = vrcp.pop %v639
        %v661 = vrcp.pop %v641
        %v662 = vrcp.pop %v643
        %v663 = vrcp.pop %v645
        %v664 = vrcp.pop %v647
        %v665 = vrcp.pop %v649
        %v666 = vmul.f32 %v587, %v650
        %v667 = vmul.f32 %v589, %v651
        %v668 = vmul.f32 %v591, %v652
        %v669 = vmul.f32 %v593, %v653
        %v670 = vmul.f32 %v595, %v654
        %v671 = vmul.f32 %v597, %v655
        %v672 = vmul.f32 %v599, %v656
        %v673 = vmul.f32 %v601, %v657
        %v674 = vmul.f32 %v603, %v658
        %v675 = vmul.f32 %v605, %v659
        %v676 = vmul.f32 %v607, %v660
        %v677 = vmul.f32 %v609, %v661
        %v678 = vmul.f32 %v611, %v662
        %v679 = vmul.f32 %v613, %v663
        %v680 = vmul.f32 %v615, %v664
        %v681 = vmul.f32 %v617, %v665
        %v682 = vpack.c.bf16 %v667, %v666
        %v683 = vpack.c.bf16 %v669, %v668
        %v684 = vpack.c.bf16 %v671, %v670
        %v685 = vpack.c.bf16 %v673, %v672
        %v686 = vpack.c.bf16 %v675, %v674
        %v687 = vpack.c.bf16 %v677, %v676
        %v688 = vpack.c.bf16 %v679, %v678
        %v689 = vpack.c.bf16 %v681, %v680
        %v706 = vunpack.c.l.b16 %v312
        %v707 = vunpack.c.l.b16 %v313
        %v708 = vunpack.c.l.b16 %v314
        %v709 = vunpack.c.l.b16 %v315
        %v710 = vunpack.c.l.b16 %v316
        %v711 = vunpack.c.l.b16 %v317
        %v712 = vunpack.c.l.b16 %v318
        %v713 = vunpack.c.l.b16 %v319
        %v714 = vunpack.c.l.b16 %v320
        %v715 = vunpack.c.l.b16 %v321
        %v716 = vunpack.c.l.b16 %v322
        %v717 = vunpack.c.l.b16 %v323
        %v718 = vunpack.c.l.b16 %v324
        %v719 = vunpack.c.l.b16 %v325
        %v720 = vunpack.c.l.b16 %v326
        %v721 = vunpack.c.l.b16 %v327
        %v722 = vpack.c.b16 %v707, %v706
        %v723 = vpack.c.b16 %v709, %v708
        %v724 = vpack.c.b16 %v711, %v710
        %v725 = vpack.c.b16 %v713, %v712
        %v726 = vpack.c.b16 %v715, %v714
        %v727 = vpack.c.b16 %v717, %v716
        %v728 = vpack.c.b16 %v719, %v718
        %v729 = vpack.c.b16 %v721, %v720
        %738 = vmatprep.subr.bf16.mxu0 0
        %739 = vmatpush1.bf16.msra.mxu0 %v729
        %740 = vmatprep.subr.bf16.mxu0 0
        %741 = vmatpush1.bf16.msra.mxu0 %v728
        %742 = vmatprep.subr.bf16.mxu0 0
        %743 = vmatpush1.bf16.msra.mxu0 %v727
        %744 = vmatprep.subr.bf16.mxu0 0
        %745 = vmatpush1.bf16.msra.mxu0 %v726
        %746 = vmatprep.subr.bf16.mxu0 0
        %747 = vmatpush1.bf16.msra.mxu0 %v725
        %748 = vmatprep.subr.bf16.mxu0 0
        %749 = vmatpush1.bf16.msra.mxu0 %v724
        %750 = vmatprep.subr.bf16.mxu0 0
        %751 = vmatpush1.bf16.msra.mxu0 %v723
        %752 = vmatprep.subr.bf16.mxu0 0
        %753 = vmatpush1.bf16.msra.mxu0 %v722
        %754 = vmatprep.subr.bf16.mxu0 0
        %755 = vmatpush2.bf16.msra.mxu0 0
        %756 = vmatprep.subr.bf16.mxu0 0
        %757 = vmatpush2.bf16.msra.mxu0 0
        %758 = vmatprep.subr.bf16.mxu0 0
        %759 = vmatpush2.bf16.msra.mxu0 0
        %760 = vmatprep.subr.bf16.mxu0 0
        %761 = vmatpush2.bf16.msra.mxu0 0
        %762 = vmatprep.subr.bf16.mxu0 0
        %763 = vmatpush2.bf16.msra.mxu0 0
        %764 = vmatprep.subr.bf16.mxu0 0
        %765 = vmatpush2.bf16.msra.mxu0 0
        %766 = vmatprep.subr.bf16.mxu0 0
        %767 = vmatpush2.bf16.msra.mxu0 0
        %768 = vmatprep.subr.bf16.mxu0 0
        %769 = vmatpush2.bf16.msra.mxu0 0
        %770 = vmatprep.mubr.bf16.mxu0 0
        %771 = vmatmul.mubr.bf16.gmra.mxu0 %v682
        %v772 = vpop.f32.mrf.mxu0
        %v773 = vadd.f32 0.0, %v772
        %v774 = vpop.f32.mrf.mxu0
        %v775 = vpop.f32.mrf.mxu0
        %v776 = vadd.f32 0.0, %v775
        %v777 = vpop.f32.mrf.mxu0
        %778 = vmatprep.mubr.bf16.mxu0 0
        %779 = vmatmul.mubr.bf16.gmra.mxu0 %v683
        %v780 = vpop.f32.mrf.mxu0
        %v781 = vadd.f32 0.0, %v780
        %v782 = vpop.f32.mrf.mxu0
        %v783 = vpop.f32.mrf.mxu0
        %v784 = vadd.f32 0.0, %v783
        %v785 = vpop.f32.mrf.mxu0
        %786 = vmatprep.mubr.bf16.mxu0 0
        %787 = vmatmul.mubr.bf16.gmra.mxu0 %v684
        %v788 = vpop.f32.mrf.mxu0
        %v789 = vadd.f32 0.0, %v788
        %v790 = vpop.f32.mrf.mxu0
        %v791 = vpop.f32.mrf.mxu0
        %v792 = vadd.f32 0.0, %v791
        %v793 = vpop.f32.mrf.mxu0
        %794 = vmatprep.mubr.bf16.mxu0 0
        %795 = vmatmul.mubr.bf16.gmra.mxu0 %v685
        %v796 = vpop.f32.mrf.mxu0
        %v797 = vadd.f32 0.0, %v796
        %v798 = vpop.f32.mrf.mxu0
        %v799 = vpop.f32.mrf.mxu0
        %v800 = vadd.f32 0.0, %v799
        %v801 = vpop.f32.mrf.mxu0
        %802 = vmatprep.mubr.bf16.mxu0 0
        %803 = vmatmul.mubr.bf16.gmra.mxu0 %v686
        %v804 = vpop.f32.mrf.mxu0
        %v805 = vadd.f32 0.0, %v804
        %v806 = vpop.f32.mrf.mxu0
        %v807 = vpop.f32.mrf.mxu0
        %v808 = vadd.f32 0.0, %v807
        %v809 = vpop.f32.mrf.mxu0
        %810 = vmatprep.mubr.bf16.mxu0 0
        %811 = vmatmul.mubr.bf16.gmra.mxu0 %v687
        %v812 = vpop.f32.mrf.mxu0
        %v813 = vadd.f32 0.0, %v812
        %v814 = vpop.f32.mrf.mxu0
        %v815 = vpop.f32.mrf.mxu0
        %v816 = vadd.f32 0.0, %v815
        %v817 = vpop.f32.mrf.mxu0
        %818 = vmatprep.mubr.bf16.mxu0 0
        %819 = vmatmul.mubr.bf16.gmra.mxu0 %v688
        %v820 = vpop.f32.mrf.mxu0
        %v821 = vadd.f32 0.0, %v820
        %v822 = vpop.f32.mrf.mxu0
        %v823 = vpop.f32.mrf.mxu0
        %v824 = vadd.f32 0.0, %v823
        %v825 = vpop.f32.mrf.mxu0
        %826 = vmatprep.mubr.bf16.mxu0 0
        %827 = vmatmul.mubr.bf16.gmra.mxu0 %v689
        %v828 = vpop.f32.mrf.mxu0
        %v829 = vadd.f32 0.0, %v828
        %v830 = vpop.f32.mrf.mxu0
        %v831 = vpop.f32.mrf.mxu0
        %v832 = vadd.f32 0.0, %v831
        %v833 = vpop.f32.mrf.mxu0
        %834 = vdwg.mxu0
        %835 = vst [vmem:[%s270] sm:$0xff] %v773
        %836 = vst [vmem:[%s270 + $0x8] sm:$0xff] %v776
        %837 = vst [vmem:[%s270 + $0x10] sm:$0xff] %v781
        %838 = vst [vmem:[%s270 + $0x18] sm:$0xff] %v784
        %839 = vst [vmem:[%s270 + $0x20] sm:$0xff] %v789
        %840 = vst [vmem:[%s270 + $0x28] sm:$0xff] %v792
        %841 = vst [vmem:[%s270 + $0x30] sm:$0xff] %v797
        %842 = vst [vmem:[%s270 + $0x38] sm:$0xff] %v800
        %843 = vst [vmem:[%s270 + $0x40] sm:$0xff] %v805
        %844 = vst [vmem:[%s270 + $0x48] sm:$0xff] %v808
        %845 = vst [vmem:[%s270 + $0x50] sm:$0xff] %v813
        %846 = vst [vmem:[%s270 + $0x58] sm:$0xff] %v816
        %847 = vst [vmem:[%s270 + $0x60] sm:$0xff] %v821
        %848 = vst [vmem:[%s270 + $0x68] sm:$0xff] %v824
        %849 = vst [vmem:[%s270 + $0x70] sm:$0xff] %v829
        %850 = vst [vmem:[%s270 + $0x78] sm:$0xff] %v832
        %s851 = scalar_lea.vmem %s220, 64 [#allocation4]
        %v852 = vld [vmem:[%s851] sm:$0xf]
        %v853 = vld [vmem:[%s851 + $0x4] sm:$0xf]
        %v854 = vld [vmem:[%s851 + $0x8] sm:$0xf]
        %v855 = vld [vmem:[%s851 + $0xc] sm:$0xf]
        %v856 = vld [vmem:[%s851 + $0x10] sm:$0xf]
        %v857 = vld [vmem:[%s851 + $0x14] sm:$0xf]
        %v858 = vld [vmem:[%s851 + $0x18] sm:$0xf]
        %v859 = vld [vmem:[%s851 + $0x1c] sm:$0xf]
        %v860 = vld [vmem:[%s851 + $0x20] sm:$0xf]
        %v861 = vld [vmem:[%s851 + $0x24] sm:$0xf]
        %v862 = vld [vmem:[%s851 + $0x28] sm:$0xf]
        %v863 = vld [vmem:[%s851 + $0x2c] sm:$0xf]
        %v864 = vld [vmem:[%s851 + $0x30] sm:$0xf]
        %v865 = vld [vmem:[%s851 + $0x34] sm:$0xf]
        %v866 = vld [vmem:[%s851 + $0x38] sm:$0xf]
        %v867 = vld [vmem:[%s851 + $0x3c] sm:$0xf]
        %s868 = scalar_lea.vmem %s229, 64 [#allocation7]
        %v869 = vld [vmem:[%s868] sm:$0xf]
        %v870 = vld [vmem:[%s868 + $0x4] sm:$0xf]
        %v871 = vld [vmem:[%s868 + $0x8] sm:$0xf]
        %v872 = vld [vmem:[%s868 + $0xc] sm:$0xf]
        %v873 = vld [vmem:[%s868 + $0x10] sm:$0xf]
        %v874 = vld [vmem:[%s868 + $0x14] sm:$0xf]
        %v875 = vld [vmem:[%s868 + $0x18] sm:$0xf]
        %v876 = vld [vmem:[%s868 + $0x1c] sm:$0xf]
        %v877 = vld [vmem:[%s868 + $0x20] sm:$0xf]
        %v878 = vld [vmem:[%s868 + $0x24] sm:$0xf]
        %v879 = vld [vmem:[%s868 + $0x28] sm:$0xf]
        %v880 = vld [vmem:[%s868 + $0x2c] sm:$0xf]
        %v881 = vld [vmem:[%s868 + $0x30] sm:$0xf]
        %v882 = vld [vmem:[%s868 + $0x34] sm:$0xf]
        %v883 = vld [vmem:[%s868 + $0x38] sm:$0xf]
        %v884 = vld [vmem:[%s868 + $0x3c] sm:$0xf]
        %s885 = scalar_lea.vmem %s238, 64 [#allocation9]
        %v886 = vld [vmem:[%s885] sm:$0xf]
        %v887 = vld [vmem:[%s885 + $0x4] sm:$0xf]
        %v888 = vld [vmem:[%s885 + $0x8] sm:$0xf]
        %v889 = vld [vmem:[%s885 + $0xc] sm:$0xf]
        %v890 = vld [vmem:[%s885 + $0x10] sm:$0xf]
        %v891 = vld [vmem:[%s885 + $0x14] sm:$0xf]
        %v892 = vld [vmem:[%s885 + $0x18] sm:$0xf]
        %v893 = vld [vmem:[%s885 + $0x1c] sm:$0xf]
        %v894 = vld [vmem:[%s885 + $0x20] sm:$0xf]
        %v895 = vld [vmem:[%s885 + $0x24] sm:$0xf]
        %v896 = vld [vmem:[%s885 + $0x28] sm:$0xf]
        %v897 = vld [vmem:[%s885 + $0x2c] sm:$0xf]
        %v898 = vld [vmem:[%s885 + $0x30] sm:$0xf]
        %v899 = vld [vmem:[%s885 + $0x34] sm:$0xf]
        %v900 = vld [vmem:[%s885 + $0x38] sm:$0xf]
        %v901 = vld [vmem:[%s885 + $0x3c] sm:$0xf]
        %v918 = vunpack.c.l.b16 %v852
        %v919 = vunpack.c.l.b16 %v853
        %v920 = vunpack.c.l.b16 %v854
        %v921 = vunpack.c.l.b16 %v855
        %v922 = vunpack.c.l.b16 %v856
        %v923 = vunpack.c.l.b16 %v857
        %v924 = vunpack.c.l.b16 %v858
        %v925 = vunpack.c.l.b16 %v859
        %v926 = vunpack.c.l.b16 %v860
        %v927 = vunpack.c.l.b16 %v861
        %v928 = vunpack.c.l.b16 %v862
        %v929 = vunpack.c.l.b16 %v863
        %v930 = vunpack.c.l.b16 %v864
        %v931 = vunpack.c.l.b16 %v865
        %v932 = vunpack.c.l.b16 %v866
        %v933 = vunpack.c.l.b16 %v867
        %v934 = vpack.c.b16 %v919, %v918
        %v935 = vpack.c.b16 %v921, %v920
        %v936 = vpack.c.b16 %v923, %v922
        %v937 = vpack.c.b16 %v925, %v924
        %v938 = vpack.c.b16 %v927, %v926
        %v939 = vpack.c.b16 %v929, %v928
        %v940 = vpack.c.b16 %v931, %v930
        %v941 = vpack.c.b16 %v933, %v932
        %v966 = vunpack.c.l.b16 %v869
        %v967 = vunpack.c.l.b16 %v870
        %v968 = vunpack.c.l.b16 %v871
        %v969 = vunpack.c.l.b16 %v872
        %v970 = vunpack.c.l.b16 %v873
        %v971 = vunpack.c.l.b16 %v874
        %v972 = vunpack.c.l.b16 %v875
        %v973 = vunpack.c.l.b16 %v876
        %v974 = vunpack.c.l.b16 %v877
        %v975 = vunpack.c.l.b16 %v878
        %v976 = vunpack.c.l.b16 %v879
        %v977 = vunpack.c.l.b16 %v880
        %v978 = vunpack.c.l.b16 %v881
        %v979 = vunpack.c.l.b16 %v882
        %v980 = vunpack.c.l.b16 %v883
        %v981 = vunpack.c.l.b16 %v884
        %v982 = vpack.c.b16 %v967, %v966
        %v983 = vpack.c.b16 %v969, %v968
        %v984 = vpack.c.b16 %v971, %v970
        %v985 = vpack.c.b16 %v973, %v972
        %v986 = vpack.c.b16 %v975, %v974
        %v987 = vpack.c.b16 %v977, %v976
        %v988 = vpack.c.b16 %v979, %v978
        %v989 = vpack.c.b16 %v981, %v980
        %998 = vmatprep.subr.bf16.mxu0 0
        %999 = vmatpush1.bf16.xpose.msra.mxu0 %v989
        %1000 = vmatprep.subr.bf16.mxu0 0
        %1001 = vmatpush1.bf16.xpose.msra.mxu0 %v988
        %1002 = vmatprep.subr.bf16.mxu0 0
        %1003 = vmatpush1.bf16.xpose.msra.mxu0 %v987
        %1004 = vmatprep.subr.bf16.mxu0 0
        %1005 = vmatpush1.bf16.xpose.msra.mxu0 %v986
        %1006 = vmatprep.subr.bf16.mxu0 0
        %1007 = vmatpush1.bf16.xpose.msra.mxu0 %v985
        %1008 = vmatprep.subr.bf16.mxu0 0
        %1009 = vmatpush1.bf16.xpose.msra.mxu0 %v984
        %1010 = vmatprep.subr.bf16.mxu0 0
        %1011 = vmatpush1.bf16.xpose.msra.mxu0 %v983
        %1012 = vmatprep.subr.bf16.mxu0 0
        %1013 = vmatpush1.bf16.xpose.msra.mxu0 %v982
        %1014 = vmatprep.subr.bf16.mxu0 0
        %1015 = vmatpush2.bf16.xpose.msra.mxu0 0
        %1016 = vmatprep.subr.bf16.mxu0 0
        %1017 = vmatpush2.bf16.xpose.msra.mxu0 0
        %1018 = vmatprep.subr.bf16.mxu0 0
        %1019 = vmatpush2.bf16.xpose.msra.mxu0 0
        %1020 = vmatprep.subr.bf16.mxu0 0
        %1021 = vmatpush2.bf16.xpose.msra.mxu0 0
        %1022 = vmatprep.subr.bf16.mxu0 0
        %1023 = vmatpush2.bf16.xpose.msra.mxu0 0
        %1024 = vmatprep.subr.bf16.mxu0 0
        %1025 = vmatpush2.bf16.xpose.msra.mxu0 0
        %1026 = vmatprep.subr.bf16.mxu0 0
        %1027 = vmatpush2.bf16.xpose.msra.mxu0 0
        %1028 = vmatprep.subr.bf16.mxu0 0
        %1029 = vmatpush2.bf16.xpose.msra.mxu0 0
        %1030 = vmatprep.mubr.bf16.mxu0 0
        %1031 = vmatmul.mubr.bf16.gmra.mxu0 %v934
        %v1032 = vpop.f32.mrf.mxu0
        %v1033 = vadd.f32 0.0, %v1032
        %v1034 = vpop.f32.mrf.mxu0
        %v1035 = vpop.f32.mrf.mxu0
        %v1036 = vadd.f32 0.0, %v1035
        %v1037 = vpop.f32.mrf.mxu0
        %1038 = vmatprep.mubr.bf16.mxu0 0
        %1039 = vmatmul.mubr.bf16.gmra.mxu0 %v935
        %v1040 = vpop.f32.mrf.mxu0
        %v1041 = vadd.f32 0.0, %v1040
        %v1042 = vpop.f32.mrf.mxu0
        %v1043 = vpop.f32.mrf.mxu0
        %v1044 = vadd.f32 0.0, %v1043
        %v1045 = vpop.f32.mrf.mxu0
        %1046 = vmatprep.mubr.bf16.mxu0 0
        %1047 = vmatmul.mubr.bf16.gmra.mxu0 %v936
        %v1048 = vpop.f32.mrf.mxu0
        %v1049 = vadd.f32 0.0, %v1048
        %v1050 = vpop.f32.mrf.mxu0
        %v1051 = vpop.f32.mrf.mxu0
        %v1052 = vadd.f32 0.0, %v1051
        %v1053 = vpop.f32.mrf.mxu0
        %1054 = vmatprep.mubr.bf16.mxu0 0
        %1055 = vmatmul.mubr.bf16.gmra.mxu0 %v937
        %v1056 = vpop.f32.mrf.mxu0
        %v1057 = vadd.f32 0.0, %v1056
        %v1058 = vpop.f32.mrf.mxu0
        %v1059 = vpop.f32.mrf.mxu0
        %v1060 = vadd.f32 0.0, %v1059
        %v1061 = vpop.f32.mrf.mxu0
        %1062 = vmatprep.mubr.bf16.mxu0 0
        %1063 = vmatmul.mubr.bf16.gmra.mxu0 %v938
        %v1064 = vpop.f32.mrf.mxu0
        %v1065 = vadd.f32 0.0, %v1064
        %v1066 = vpop.f32.mrf.mxu0
        %v1067 = vpop.f32.mrf.mxu0
        %v1068 = vadd.f32 0.0, %v1067
        %v1069 = vpop.f32.mrf.mxu0
        %1070 = vmatprep.mubr.bf16.mxu0 0
        %1071 = vmatmul.mubr.bf16.gmra.mxu0 %v939
        %v1072 = vpop.f32.mrf.mxu0
        %v1073 = vadd.f32 0.0, %v1072
        %v1074 = vpop.f32.mrf.mxu0
        %v1075 = vpop.f32.mrf.mxu0
        %v1076 = vadd.f32 0.0, %v1075
        %v1077 = vpop.f32.mrf.mxu0
        %1078 = vmatprep.mubr.bf16.mxu0 0
        %1079 = vmatmul.mubr.bf16.gmra.mxu0 %v940
        %v1080 = vpop.f32.mrf.mxu0
        %v1081 = vadd.f32 0.0, %v1080
        %v1082 = vpop.f32.mrf.mxu0
        %v1083 = vpop.f32.mrf.mxu0
        %v1084 = vadd.f32 0.0, %v1083
        %v1085 = vpop.f32.mrf.mxu0
        %1086 = vmatprep.mubr.bf16.mxu0 0
        %1087 = vmatmul.mubr.bf16.gmra.mxu0 %v941
        %v1088 = vpop.f32.mrf.mxu0
        %v1089 = vadd.f32 0.0, %v1088
        %v1090 = vpop.f32.mrf.mxu0
        %v1091 = vpop.f32.mrf.mxu0
        %v1092 = vadd.f32 0.0, %v1091
        %v1093 = vpop.f32.mrf.mxu0
        %1094 = vdwg.mxu0
        %v1095 = vmul.f32 %v1033, %v521
        %v1096 = vmul.f32 %v1036, %v521
        %v1097 = vmul.f32 %v1041, %v521
        %v1098 = vmul.f32 %v1044, %v521
        %v1099 = vmul.f32 %v1049, %v521
        %v1100 = vmul.f32 %v1052, %v521
        %v1101 = vmul.f32 %v1057, %v521
        %v1102 = vmul.f32 %v1060, %v521
        %v1103 = vmul.f32 %v1065, %v521
        %v1104 = vmul.f32 %v1068, %v521
        %v1105 = vmul.f32 %v1073, %v521
        %v1106 = vmul.f32 %v1076, %v521
        %v1107 = vmul.f32 %v1081, %v521
        %v1108 = vmul.f32 %v1084, %v521
        %v1109 = vmul.f32 %v1089, %v521
        %v1110 = vmul.f32 %v1092, %v521
        %1111 = vmax.xlane.f32.xlu0 %v1095
        %v1112 = vpop.xlane.xlu0 %1111
        %1113 = vmax.xlane.f32.xlu0 %v1096
        %v1114 = vpop.xlane.xlu0 %1113
        %1115 = vmax.xlane.f32.xlu0 %v1097
        %v1116 = vpop.xlane.xlu0 %1115
        %1117 = vmax.xlane.f32.xlu0 %v1098
        %v1118 = vpop.xlane.xlu0 %1117
        %1119 = vmax.xlane.f32.xlu0 %v1099
        %v1120 = vpop.xlane.xlu0 %1119
        %1121 = vmax.xlane.f32.xlu0 %v1100
        %v1122 = vpop.xlane.xlu0 %1121
        %1123 = vmax.xlane.f32.xlu0 %v1101
        %v1124 = vpop.xlane.xlu0 %1123
        %1125 = vmax.xlane.f32.xlu0 %v1102
        %v1126 = vpop.xlane.xlu0 %1125
        %1127 = vmax.xlane.f32.xlu0 %v1103
        %v1128 = vpop.xlane.xlu0 %1127
        %1129 = vmax.xlane.f32.xlu0 %v1104
        %v1130 = vpop.xlane.xlu0 %1129
        %1131 = vmax.xlane.f32.xlu0 %v1105
        %v1132 = vpop.xlane.xlu0 %1131
        %1133 = vmax.xlane.f32.xlu0 %v1106
        %v1134 = vpop.xlane.xlu0 %1133
        %1135 = vmax.xlane.f32.xlu0 %v1107
        %v1136 = vpop.xlane.xlu0 %1135
        %1137 = vmax.xlane.f32.xlu0 %v1108
        %v1138 = vpop.xlane.xlu0 %1137
        %1139 = vmax.xlane.f32.xlu0 %v1109
        %v1140 = vpop.xlane.xlu0 %1139
        %1141 = vmax.xlane.f32.xlu0 %v1110
        %v1142 = vpop.xlane.xlu0 %1141
        %v1143 = vsub.f32 %v1095, %v1112
        %v1144 = vsub.f32 %v1096, %v1114
        %v1145 = vsub.f32 %v1097, %v1116
        %v1146 = vsub.f32 %v1098, %v1118
        %v1147 = vsub.f32 %v1099, %v1120
        %v1148 = vsub.f32 %v1100, %v1122
        %v1149 = vsub.f32 %v1101, %v1124
        %v1150 = vsub.f32 %v1102, %v1126
        %v1151 = vsub.f32 %v1103, %v1128
        %v1152 = vsub.f32 %v1104, %v1130
        %v1153 = vsub.f32 %v1105, %v1132
        %v1154 = vsub.f32 %v1106, %v1134
        %v1155 = vsub.f32 %v1107, %v1136
        %v1156 = vsub.f32 %v1108, %v1138
        %v1157 = vsub.f32 %v1109, %v1140
        %v1158 = vsub.f32 %v1110, %v1142
        %v1159 = vmul.f32 %v1143, 1.442695
        %v1160 = vpow.pop %v1159
        %v1161 = vmul.f32 %v1144, 1.442695
        %v1162 = vpow.pop %v1161
        %v1163 = vmul.f32 %v1145, 1.442695
        %v1164 = vpow.pop %v1163
        %v1165 = vmul.f32 %v1146, 1.442695
        %v1166 = vpow.pop %v1165
        %v1167 = vmul.f32 %v1147, 1.442695
        %v1168 = vpow.pop %v1167
        %v1169 = vmul.f32 %v1148, 1.442695
        %v1170 = vpow.pop %v1169
        %v1171 = vmul.f32 %v1149, 1.442695
        %v1172 = vpow.pop %v1171
        %v1173 = vmul.f32 %v1150, 1.442695
        %v1174 = vpow.pop %v1173
        %v1175 = vmul.f32 %v1151, 1.442695
        %v1176 = vpow.pop %v1175
        %v1177 = vmul.f32 %v1152, 1.442695
        %v1178 = vpow.pop %v1177
        %v1179 = vmul.f32 %v1153, 1.442695
        %v1180 = vpow.pop %v1179
        %v1181 = vmul.f32 %v1154, 1.442695
        %v1182 = vpow.pop %v1181
        %v1183 = vmul.f32 %v1155, 1.442695
        %v1184 = vpow.pop %v1183
        %v1185 = vmul.f32 %v1156, 1.442695
        %v1186 = vpow.pop %v1185
        %v1187 = vmul.f32 %v1157, 1.442695
        %v1188 = vpow.pop %v1187
        %v1189 = vmul.f32 %v1158, 1.442695
        %v1190 = vpow.pop %v1189
        %1191 = vadd.xlane.f32.xlu0 %v1160
        %v1192 = vpop.xlane.xlu0 %1191
        %1193 = vadd.xlane.f32.xlu0 %v1162
        %v1194 = vpop.xlane.xlu0 %1193
        %1195 = vadd.xlane.f32.xlu0 %v1164
        %v1196 = vpop.xlane.xlu0 %1195
        %1197 = vadd.xlane.f32.xlu0 %v1166
        %v1198 = vpop.xlane.xlu0 %1197
        %1199 = vadd.xlane.f32.xlu0 %v1168
        %v1200 = vpop.xlane.xlu0 %1199
        %1201 = vadd.xlane.f32.xlu0 %v1170
        %v1202 = vpop.xlane.xlu0 %1201
        %1203 = vadd.xlane.f32.xlu0 %v1172
        %v1204 = vpop.xlane.xlu0 %1203
        %1205 = vadd.xlane.f32.xlu0 %v1174
        %v1206 = vpop.xlane.xlu0 %1205
        %1207 = vadd.xlane.f32.xlu0 %v1176
        %v1208 = vpop.xlane.xlu0 %1207
        %1209 = vadd.xlane.f32.xlu0 %v1178
        %v1210 = vpop.xlane.xlu0 %1209
        %1211 = vadd.xlane.f32.xlu0 %v1180
        %v1212 = vpop.xlane.xlu0 %1211
        %1213 = vadd.xlane.f32.xlu0 %v1182
        %v1214 = vpop.xlane.xlu0 %1213
        %1215 = vadd.xlane.f32.xlu0 %v1184
        %v1216 = vpop.xlane.xlu0 %1215
        %1217 = vadd.xlane.f32.xlu0 %v1186
        %v1218 = vpop.xlane.xlu0 %1217
        %1219 = vadd.xlane.f32.xlu0 %v1188
        %v1220 = vpop.xlane.xlu0 %1219
        %1221 = vadd.xlane.f32.xlu0 %v1190
        %v1222 = vpop.xlane.xlu0 %1221
        %v1223 = vrcp.pop %v1192
        %v1224 = vrcp.pop %v1194
        %v1225 = vrcp.pop %v1196
        %v1226 = vrcp.pop %v1198
        %v1227 = vrcp.pop %v1200
        %v1228 = vrcp.pop %v1202
        %v1229 = vrcp.pop %v1204
        %v1230 = vrcp.pop %v1206
        %v1231 = vrcp.pop %v1208
        %v1232 = vrcp.pop %v1210
        %v1233 = vrcp.pop %v1212
        %v1234 = vrcp.pop %v1214
        %v1235 = vrcp.pop %v1216
        %v1236 = vrcp.pop %v1218
        %v1237 = vrcp.pop %v1220
        %v1238 = vrcp.pop %v1222
        %v1239 = vmul.f32 %v1160, %v1223
        %v1240 = vmul.f32 %v1162, %v1224
        %v1241 = vmul.f32 %v1164, %v1225
        %v1242 = vmul.f32 %v1166, %v1226
        %v1243 = vmul.f32 %v1168, %v1227
        %v1244 = vmul.f32 %v1170, %v1228
        %v1245 = vmul.f32 %v1172, %v1229
        %v1246 = vmul.f32 %v1174, %v1230
        %v1247 = vmul.f32 %v1176, %v1231
        %v1248 = vmul.f32 %v1178, %v1232
        %v1249 = vmul.f32 %v1180, %v1233
        %v1250 = vmul.f32 %v1182, %v1234
        %v1251 = vmul.f32 %v1184, %v1235
        %v1252 = vmul.f32 %v1186, %v1236
        %v1253 = vmul.f32 %v1188, %v1237
        %v1254 = vmul.f32 %v1190, %v1238
        %v1255 = vpack.c.bf16 %v1240, %v1239
        %v1256 = vpack.c.bf16 %v1242, %v1241
        %v1257 = vpack.c.bf16 %v1244, %v1243
        %v1258 = vpack.c.bf16 %v1246, %v1245
        %v1259 = vpack.c.bf16 %v1248, %v1247
        %v1260 = vpack.c.bf16 %v1250, %v1249
        %v1261 = vpack.c.bf16 %v1252, %v1251
        %v1262 = vpack.c.bf16 %v1254, %v1253
        %v1279 = vunpack.c.l.b16 %v886
        %v1280 = vunpack.c.l.b16 %v887
        %v1281 = vunpack.c.l.b16 %v888
        %v1282 = vunpack.c.l.b16 %v889
        %v1283 = vunpack.c.l.b16 %v890
        %v1284 = vunpack.c.l.b16 %v891
        %v1285 = vunpack.c.l.b16 %v892
        %v1286 = vunpack.c.l.b16 %v893
        %v1287 = vunpack.c.l.b16 %v894
        %v1288 = vunpack.c.l.b16 %v895
        %v1289 = vunpack.c.l.b16 %v896
        %v1290 = vunpack.c.l.b16 %v897
        %v1291 = vunpack.c.l.b16 %v898
        %v1292 = vunpack.c.l.b16 %v899
        %v1293 = vunpack.c.l.b16 %v900
        %v1294 = vunpack.c.l.b16 %v901
        %v1295 = vpack.c.b16 %v1280, %v1279
        %v1296 = vpack.c.b16 %v1282, %v1281
        %v1297 = vpack.c.b16 %v1284, %v1283
        %v1298 = vpack.c.b16 %v1286, %v1285
        %v1299 = vpack.c.b16 %v1288, %v1287
        %v1300 = vpack.c.b16 %v1290, %v1289
        %v1301 = vpack.c.b16 %v1292, %v1291
        %v1302 = vpack.c.b16 %v1294, %v1293
        %1311 = vmatprep.subr.bf16.mxu0 0
        %1312 = vmatpush1.bf16.msra.mxu0 %v1302
        %1313 = vmatprep.subr.bf16.mxu0 0
        %1314 = vmatpush1.bf16.msra.mxu0 %v1301
        %1315 = vmatprep.subr.bf16.mxu0 0
        %1316 = vmatpush1.bf16.msra.mxu0 %v1300
        %1317 = vmatprep.subr.bf16.mxu0 0
        %1318 = vmatpush1.bf16.msra.mxu0 %v1299
        %1319 = vmatprep.subr.bf16.mxu0 0
        %1320 = vmatpush1.bf16.msra.mxu0 %v1298
        %1321 = vmatprep.subr.bf16.mxu0 0
        %1322 = vmatpush1.bf16.msra.mxu0 %v1297
        %1323 = vmatprep.subr.bf16.mxu0 0
        %1324 = vmatpush1.bf16.msra.mxu0 %v1296
        %1325 = vmatprep.subr.bf16.mxu0 0
        %1326 = vmatpush1.bf16.msra.mxu0 %v1295
        %1327 = vmatprep.subr.bf16.mxu0 0
        %1328 = vmatpush2.bf16.msra.mxu0 0
        %1329 = vmatprep.subr.bf16.mxu0 0
        %1330 = vmatpush2.bf16.msra.mxu0 0
        %1331 = vmatprep.subr.bf16.mxu0 0
        %1332 = vmatpush2.bf16.msra.mxu0 0
        %1333 = vmatprep.subr.bf16.mxu0 0
        %1334 = vmatpush2.bf16.msra.mxu0 0
        %1335 = vmatprep.subr.bf16.mxu0 0
        %1336 = vmatpush2.bf16.msra.mxu0 0
        %1337 = vmatprep.subr.bf16.mxu0 0
        %1338 = vmatpush2.bf16.msra.mxu0 0
        %1339 = vmatprep.subr.bf16.mxu0 0
        %1340 = vmatpush2.bf16.msra.mxu0 0
        %1341 = vmatprep.subr.bf16.mxu0 0
        %1342 = vmatpush2.bf16.msra.mxu0 0
        %1343 = vmatprep.mubr.bf16.mxu0 0
        %1344 = vmatmul.mubr.bf16.gmra.mxu0 %v1255
        %v1345 = vpop.f32.mrf.mxu0
        %v1346 = vadd.f32 0.0, %v1345
        %v1347 = vpop.f32.mrf.mxu0
        %v1348 = vpop.f32.mrf.mxu0
        %v1349 = vadd.f32 0.0, %v1348
        %v1350 = vpop.f32.mrf.mxu0
        %1351 = vmatprep.mubr.bf16.mxu0 0
        %1352 = vmatmul.mubr.bf16.gmra.mxu0 %v1256
        %v1353 = vpop.f32.mrf.mxu0
        %v1354 = vadd.f32 0.0, %v1353
        %v1355 = vpop.f32.mrf.mxu0
        %v1356 = vpop.f32.mrf.mxu0
        %v1357 = vadd.f32 0.0, %v1356
        %v1358 = vpop.f32.mrf.mxu0
        %1359 = vmatprep.mubr.bf16.mxu0 0
        %1360 = vmatmul.mubr.bf16.gmra.mxu0 %v1257
        %v1361 = vpop.f32.mrf.mxu0
        %v1362 = vadd.f32 0.0, %v1361
        %v1363 = vpop.f32.mrf.mxu0
        %v1364 = vpop.f32.mrf.mxu0
        %v1365 = vadd.f32 0.0, %v1364
        %v1366 = vpop.f32.mrf.mxu0
        %1367 = vmatprep.mubr.bf16.mxu0 0
        %1368 = vmatmul.mubr.bf16.gmra.mxu0 %v1258
        %v1369 = vpop.f32.mrf.mxu0
        %v1370 = vadd.f32 0.0, %v1369
        %v1371 = vpop.f32.mrf.mxu0
        %v1372 = vpop.f32.mrf.mxu0
        %v1373 = vadd.f32 0.0, %v1372
        %v1374 = vpop.f32.mrf.mxu0
        %1375 = vmatprep.mubr.bf16.mxu0 0
        %1376 = vmatmul.mubr.bf16.gmra.mxu0 %v1259
        %v1377 = vpop.f32.mrf.mxu0
        %v1378 = vadd.f32 0.0, %v1377
        %v1379 = vpop.f32.mrf.mxu0
        %v1380 = vpop.f32.mrf.mxu0
        %v1381 = vadd.f32 0.0, %v1380
        %v1382 = vpop.f32.mrf.mxu0
        %1383 = vmatprep.mubr.bf16.mxu0 0
        %1384 = vmatmul.mubr.bf16.gmra.mxu0 %v1260
        %v1385 = vpop.f32.mrf.mxu0
        %v1386 = vadd.f32 0.0, %v1385
        %v1387 = vpop.f32.mrf.mxu0
        %v1388 = vpop.f32.mrf.mxu0
        %v1389 = vadd.f32 0.0, %v1388
        %v1390 = vpop.f32.mrf.mxu0
        %1391 = vmatprep.mubr.bf16.mxu0 0
        %1392 = vmatmul.mubr.bf16.gmra.mxu0 %v1261
        %v1393 = vpop.f32.mrf.mxu0
        %v1394 = vadd.f32 0.0, %v1393
        %v1395 = vpop.f32.mrf.mxu0
        %v1396 = vpop.f32.mrf.mxu0
        %v1397 = vadd.f32 0.0, %v1396
        %v1398 = vpop.f32.mrf.mxu0
        %1399 = vmatprep.mubr.bf16.mxu0 0
        %1400 = vmatmul.mubr.bf16.gmra.mxu0 %v1262
        %v1401 = vpop.f32.mrf.mxu0
        %v1402 = vadd.f32 0.0, %v1401
        %v1403 = vpop.f32.mrf.mxu0
        %v1404 = vpop.f32.mrf.mxu0
        %v1405 = vadd.f32 0.0, %v1404
        %v1406 = vpop.f32.mrf.mxu0
        %1407 = vdwg.mxu0
        %s1408 = scalar_lea.vmem %s270, 128 [#allocation10]
        %1409 = vst [vmem:[%s1408] sm:$0xff] %v1346
        %1410 = vst [vmem:[%s1408 + $0x8] sm:$0xff] %v1349
        %1411 = vst [vmem:[%s1408 + $0x10] sm:$0xff] %v1354
        %1412 = vst [vmem:[%s1408 + $0x18] sm:$0xff] %v1357
        %1413 = vst [vmem:[%s1408 + $0x20] sm:$0xff] %v1362
        %1414 = vst [vmem:[%s1408 + $0x28] sm:$0xff] %v1365
        %1415 = vst [vmem:[%s1408 + $0x30] sm:$0xff] %v1370
        %1416 = vst [vmem:[%s1408 + $0x38] sm:$0xff] %v1373
        %1417 = vst [vmem:[%s1408 + $0x40] sm:$0xff] %v1378
        %1418 = vst [vmem:[%s1408 + $0x48] sm:$0xff] %v1381
        %1419 = vst [vmem:[%s1408 + $0x50] sm:$0xff] %v1386
        %1420 = vst [vmem:[%s1408 + $0x58] sm:$0xff] %v1389
        %1421 = vst [vmem:[%s1408 + $0x60] sm:$0xff] %v1394
        %1422 = vst [vmem:[%s1408 + $0x68] sm:$0xff] %v1397
        %1423 = vst [vmem:[%s1408 + $0x70] sm:$0xff] %v1402
        %1424 = vst [vmem:[%s1408 + $0x78] sm:$0xff] %v1405
        %s1425 = scalar_lea.vmem %s220, 128 [#allocation4]
        %v1426 = vld [vmem:[%s1425] sm:$0xf]
        %v1427 = vld [vmem:[%s1425 + $0x4] sm:$0xf]
        %v1428 = vld [vmem:[%s1425 + $0x8] sm:$0xf]
        %v1429 = vld [vmem:[%s1425 + $0xc] sm:$0xf]
        %v1430 = vld [vmem:[%s1425 + $0x10] sm:$0xf]
        %v1431 = vld [vmem:[%s1425 + $0x14] sm:$0xf]
        %v1432 = vld [vmem:[%s1425 + $0x18] sm:$0xf]
        %v1433 = vld [vmem:[%s1425 + $0x1c] sm:$0xf]
        %v1434 = vld [vmem:[%s1425 + $0x20] sm:$0xf]
        %v1435 = vld [vmem:[%s1425 + $0x24] sm:$0xf]
        %v1436 = vld [vmem:[%s1425 + $0x28] sm:$0xf]
        %v1437 = vld [vmem:[%s1425 + $0x2c] sm:$0xf]
        %v1438 = vld [vmem:[%s1425 + $0x30] sm:$0xf]
        %v1439 = vld [vmem:[%s1425 + $0x34] sm:$0xf]
        %v1440 = vld [vmem:[%s1425 + $0x38] sm:$0xf]
        %v1441 = vld [vmem:[%s1425 + $0x3c] sm:$0xf]
        %s1442 = scalar_lea.vmem %s229, 128 [#allocation7]
        %v1443 = vld [vmem:[%s1442] sm:$0xf]
        %v1444 = vld [vmem:[%s1442 + $0x4] sm:$0xf]
        %v1445 = vld [vmem:[%s1442 + $0x8] sm:$0xf]
        %v1446 = vld [vmem:[%s1442 + $0xc] sm:$0xf]
        %v1447 = vld [vmem:[%s1442 + $0x10] sm:$0xf]
        %v1448 = vld [vmem:[%s1442 + $0x14] sm:$0xf]
        %v1449 = vld [vmem:[%s1442 + $0x18] sm:$0xf]
        %v1450 = vld [vmem:[%s1442 + $0x1c] sm:$0xf]
        %v1451 = vld [vmem:[%s1442 + $0x20] sm:$0xf]
        %v1452 = vld [vmem:[%s1442 + $0x24] sm:$0xf]
        %v1453 = vld [vmem:[%s1442 + $0x28] sm:$0xf]
        %v1454 = vld [vmem:[%s1442 + $0x2c] sm:$0xf]
        %v1455 = vld [vmem:[%s1442 + $0x30] sm:$0xf]
        %v1456 = vld [vmem:[%s1442 + $0x34] sm:$0xf]
        %v1457 = vld [vmem:[%s1442 + $0x38] sm:$0xf]
        %v1458 = vld [vmem:[%s1442 + $0x3c] sm:$0xf]
        %s1459 = scalar_lea.vmem %s238, 128 [#allocation9]
        %v1460 = vld [vmem:[%s1459] sm:$0xf]
        %v1461 = vld [vmem:[%s1459 + $0x4] sm:$0xf]
        %v1462 = vld [vmem:[%s1459 + $0x8] sm:$0xf]
        %v1463 = vld [vmem:[%s1459 + $0xc] sm:$0xf]
        %v1464 = vld [vmem:[%s1459 + $0x10] sm:$0xf]
        %v1465 = vld [vmem:[%s1459 + $0x14] sm:$0xf]
        %v1466 = vld [vmem:[%s1459 + $0x18] sm:$0xf]
        %v1467 = vld [vmem:[%s1459 + $0x1c] sm:$0xf]
        %v1468 = vld [vmem:[%s1459 + $0x20] sm:$0xf]
        %v1469 = vld [vmem:[%s1459 + $0x24] sm:$0xf]
        %v1470 = vld [vmem:[%s1459 + $0x28] sm:$0xf]
        %v1471 = vld [vmem:[%s1459 + $0x2c] sm:$0xf]
        %v1472 = vld [vmem:[%s1459 + $0x30] sm:$0xf]
        %v1473 = vld [vmem:[%s1459 + $0x34] sm:$0xf]
        %v1474 = vld [vmem:[%s1459 + $0x38] sm:$0xf]
        %v1475 = vld [vmem:[%s1459 + $0x3c] sm:$0xf]
        %v1492 = vunpack.c.l.b16 %v1426
        %v1493 = vunpack.c.l.b16 %v1427
        %v1494 = vunpack.c.l.b16 %v1428
        %v1495 = vunpack.c.l.b16 %v1429
        %v1496 = vunpack.c.l.b16 %v1430
        %v1497 = vunpack.c.l.b16 %v1431
        %v1498 = vunpack.c.l.b16 %v1432
        %v1499 = vunpack.c.l.b16 %v1433
        %v1500 = vunpack.c.l.b16 %v1434
        %v1501 = vunpack.c.l.b16 %v1435
        %v1502 = vunpack.c.l.b16 %v1436
        %v1503 = vunpack.c.l.b16 %v1437
        %v1504 = vunpack.c.l.b16 %v1438
        %v1505 = vunpack.c.l.b16 %v1439
        %v1506 = vunpack.c.l.b16 %v1440
        %v1507 = vunpack.c.l.b16 %v1441
        %v1508 = vpack.c.b16 %v1493, %v1492
        %v1509 = vpack.c.b16 %v1495, %v1494
        %v1510 = vpack.c.b16 %v1497, %v1496
        %v1511 = vpack.c.b16 %v1499, %v1498
        %v1512 = vpack.c.b16 %v1501, %v1500
        %v1513 = vpack.c.b16 %v1503, %v1502
        %v1514 = vpack.c.b16 %v1505, %v1504
        %v1515 = vpack.c.b16 %v1507, %v1506
        %v1540 = vunpack.c.l.b16 %v1443
        %v1541 = vunpack.c.l.b16 %v1444
        %v1542 = vunpack.c.l.b16 %v1445
        %v1543 = vunpack.c.l.b16 %v1446
        %v1544 = vunpack.c.l.b16 %v1447
        %v1545 = vunpack.c.l.b16 %v1448
        %v1546 = vunpack.c.l.b16 %v1449
        %v1547 = vunpack.c.l.b16 %v1450
        %v1548 = vunpack.c.l.b16 %v1451
        %v1549 = vunpack.c.l.b16 %v1452
        %v1550 = vunpack.c.l.b16 %v1453
        %v1551 = vunpack.c.l.b16 %v1454
        %v1552 = vunpack.c.l.b16 %v1455
        %v1553 = vunpack.c.l.b16 %v1456
        %v1554 = vunpack.c.l.b16 %v1457
        %v1555 = vunpack.c.l.b16 %v1458
        %v1556 = vpack.c.b16 %v1541, %v1540
        %v1557 = vpack.c.b16 %v1543, %v1542
        %v1558 = vpack.c.b16 %v1545, %v1544
        %v1559 = vpack.c.b16 %v1547, %v1546
        %v1560 = vpack.c.b16 %v1549, %v1548
        %v1561 = vpack.c.b16 %v1551, %v1550
        %v1562 = vpack.c.b16 %v1553, %v1552
        %v1563 = vpack.c.b16 %v1555, %v1554
        %1572 = vmatprep.subr.bf16.mxu0 0
        %1573 = vmatpush1.bf16.xpose.msra.mxu0 %v1563
        %1574 = vmatprep.subr.bf16.mxu0 0
        %1575 = vmatpush1.bf16.xpose.msra.mxu0 %v1562
        %1576 = vmatprep.subr.bf16.mxu0 0
        %1577 = vmatpush1.bf16.xpose.msra.mxu0 %v1561
        %1578 = vmatprep.subr.bf16.mxu0 0
        %1579 = vmatpush1.bf16.xpose.msra.mxu0 %v1560
        %1580 = vmatprep.subr.bf16.mxu0 0
        %1581 = vmatpush1.bf16.xpose.msra.mxu0 %v1559
        %1582 = vmatprep.subr.bf16.mxu0 0
        %1583 = vmatpush1.bf16.xpose.msra.mxu0 %v1558
        %1584 = vmatprep.subr.bf16.mxu0 0
        %1585 = vmatpush1.bf16.xpose.msra.mxu0 %v1557
        %1586 = vmatprep.subr.bf16.mxu0 0
        %1587 = vmatpush1.bf16.xpose.msra.mxu0 %v1556
        %1588 = vmatprep.subr.bf16.mxu0 0
        %1589 = vmatpush2.bf16.xpose.msra.mxu0 0
        %1590 = vmatprep.subr.bf16.mxu0 0
        %1591 = vmatpush2.bf16.xpose.msra.mxu0 0
        %1592 = vmatprep.subr.bf16.mxu0 0
        %1593 = vmatpush2.bf16.xpose.msra.mxu0 0
        %1594 = vmatprep.subr.bf16.mxu0 0
        %1595 = vmatpush2.bf16.xpose.msra.mxu0 0
        %1596 = vmatprep.subr.bf16.mxu0 0
        %1597 = vmatpush2.bf16.xpose.msra.mxu0 0
        %1598 = vmatprep.subr.bf16.mxu0 0
        %1599 = vmatpush2.bf16.xpose.msra.mxu0 0
        %1600 = vmatprep.subr.bf16.mxu0 0
        %1601 = vmatpush2.bf16.xpose.msra.mxu0 0
        %1602 = vmatprep.subr.bf16.mxu0 0
        %1603 = vmatpush2.bf16.xpose.msra.mxu0 0
        %1604 = vmatprep.mubr.bf16.mxu0 0
        %1605 = vmatmul.mubr.bf16.gmra.mxu0 %v1508
        %v1606 = vpop.f32.mrf.mxu0
        %v1607 = vadd.f32 0.0, %v1606
        %v1608 = vpop.f32.mrf.mxu0
        %v1609 = vpop.f32.mrf.mxu0
        %v1610 = vadd.f32 0.0, %v1609
        %v1611 = vpop.f32.mrf.mxu0
        %1612 = vmatprep.mubr.bf16.mxu0 0
        %1613 = vmatmul.mubr.bf16.gmra.mxu0 %v1509
        %v1614 = vpop.f32.mrf.mxu0
        %v1615 = vadd.f32 0.0, %v1614
        %v1616 = vpop.f32.mrf.mxu0
        %v1617 = vpop.f32.mrf.mxu0
        %v1618 = vadd.f32 0.0, %v1617
        %v1619 = vpop.f32.mrf.mxu0
        %1620 = vmatprep.mubr.bf16.mxu0 0
        %1621 = vmatmul.mubr.bf16.gmra.mxu0 %v1510
        %v1622 = vpop.f32.mrf.mxu0
        %v1623 = vadd.f32 0.0, %v1622
        %v1624 = vpop.f32.mrf.mxu0
        %v1625 = vpop.f32.mrf.mxu0
        %v1626 = vadd.f32 0.0, %v1625
        %v1627 = vpop.f32.mrf.mxu0
        %1628 = vmatprep.mubr.bf16.mxu0 0
        %1629 = vmatmul.mubr.bf16.gmra.mxu0 %v1511
        %v1630 = vpop.f32.mrf.mxu0
        %v1631 = vadd.f32 0.0, %v1630
        %v1632 = vpop.f32.mrf.mxu0
        %v1633 = vpop.f32.mrf.mxu0
        %v1634 = vadd.f32 0.0, %v1633
        %v1635 = vpop.f32.mrf.mxu0
        %1636 = vmatprep.mubr.bf16.mxu0 0
        %1637 = vmatmul.mubr.bf16.gmra.mxu0 %v1512
        %v1638 = vpop.f32.mrf.mxu0
        %v1639 = vadd.f32 0.0, %v1638
        %v1640 = vpop.f32.mrf.mxu0
        %v1641 = vpop.f32.mrf.mxu0
        %v1642 = vadd.f32 0.0, %v1641
        %v1643 = vpop.f32.mrf.mxu0
        %1644 = vmatprep.mubr.bf16.mxu0 0
        %1645 = vmatmul.mubr.bf16.gmra.mxu0 %v1513
        %v1646 = vpop.f32.mrf.mxu0
        %v1647 = vadd.f32 0.0, %v1646
        %v1648 = vpop.f32.mrf.mxu0
        %v1649 = vpop.f32.mrf.mxu0
        %v1650 = vadd.f32 0.0, %v1649
        %v1651 = vpop.f32.mrf.mxu0
        %1652 = vmatprep.mubr.bf16.mxu0 0
        %1653 = vmatmul.mubr.bf16.gmra.mxu0 %v1514
        %v1654 = vpop.f32.mrf.mxu0
        %v1655 = vadd.f32 0.0, %v1654
        %v1656 = vpop.f32.mrf.mxu0
        %v1657 = vpop.f32.mrf.mxu0
        %v1658 = vadd.f32 0.0, %v1657
        %v1659 = vpop.f32.mrf.mxu0
        %1660 = vmatprep.mubr.bf16.mxu0 0
        %1661 = vmatmul.mubr.bf16.gmra.mxu0 %v1515
        %v1662 = vpop.f32.mrf.mxu0
        %v1663 = vadd.f32 0.0, %v1662
        %v1664 = vpop.f32.mrf.mxu0
        %v1665 = vpop.f32.mrf.mxu0
        %v1666 = vadd.f32 0.0, %v1665
        %v1667 = vpop.f32.mrf.mxu0
        %1668 = vdwg.mxu0
        %v1669 = vmul.f32 %v1607, %v521
        %v1670 = vmul.f32 %v1610, %v521
        %v1671 = vmul.f32 %v1615, %v521
        %v1672 = vmul.f32 %v1618, %v521
        %v1673 = vmul.f32 %v1623, %v521
        %v1674 = vmul.f32 %v1626, %v521
        %v1675 = vmul.f32 %v1631, %v521
        %v1676 = vmul.f32 %v1634, %v521
        %v1677 = vmul.f32 %v1639, %v521
        %v1678 = vmul.f32 %v1642, %v521
        %v1679 = vmul.f32 %v1647, %v521
        %v1680 = vmul.f32 %v1650, %v521
        %v1681 = vmul.f32 %v1655, %v521
        %v1682 = vmul.f32 %v1658, %v521
        %v1683 = vmul.f32 %v1663, %v521
        %v1684 = vmul.f32 %v1666, %v521
        %1685 = vmax.xlane.f32.xlu0 %v1669
        %v1686 = vpop.xlane.xlu0 %1685
        %1687 = vmax.xlane.f32.xlu0 %v1670
        %v1688 = vpop.xlane.xlu0 %1687
        %1689 = vmax.xlane.f32.xlu0 %v1671
        %v1690 = vpop.xlane.xlu0 %1689
        %1691 = vmax.xlane.f32.xlu0 %v1672
        %v1692 = vpop.xlane.xlu0 %1691
        %1693 = vmax.xlane.f32.xlu0 %v1673
        %v1694 = vpop.xlane.xlu0 %1693
        %1695 = vmax.xlane.f32.xlu0 %v1674
        %v1696 = vpop.xlane.xlu0 %1695
        %1697 = vmax.xlane.f32.xlu0 %v1675
        %v1698 = vpop.xlane.xlu0 %1697
        %1699 = vmax.xlane.f32.xlu0 %v1676
        %v1700 = vpop.xlane.xlu0 %1699
        %1701 = vmax.xlane.f32.xlu0 %v1677
        %v1702 = vpop.xlane.xlu0 %1701
        %1703 = vmax.xlane.f32.xlu0 %v1678
        %v1704 = vpop.xlane.xlu0 %1703
        %1705 = vmax.xlane.f32.xlu0 %v1679
        %v1706 = vpop.xlane.xlu0 %1705
        %1707 = vmax.xlane.f32.xlu0 %v1680
        %v1708 = vpop.xlane.xlu0 %1707
        %1709 = vmax.xlane.f32.xlu0 %v1681
        %v1710 = vpop.xlane.xlu0 %1709
        %1711 = vmax.xlane.f32.xlu0 %v1682
        %v1712 = vpop.xlane.xlu0 %1711
        %1713 = vmax.xlane.f32.xlu0 %v1683
        %v1714 = vpop.xlane.xlu0 %1713
        %1715 = vmax.xlane.f32.xlu0 %v1684
        %v1716 = vpop.xlane.xlu0 %1715
        %v1717 = vsub.f32 %v1669, %v1686
        %v1718 = vsub.f32 %v1670, %v1688
        %v1719 = vsub.f32 %v1671, %v1690
        %v1720 = vsub.f32 %v1672, %v1692
        %v1721 = vsub.f32 %v1673, %v1694
        %v1722 = vsub.f32 %v1674, %v1696
        %v1723 = vsub.f32 %v1675, %v1698
        %v1724 = vsub.f32 %v1676, %v1700
        %v1725 = vsub.f32 %v1677, %v1702
        %v1726 = vsub.f32 %v1678, %v1704
        %v1727 = vsub.f32 %v1679, %v1706
        %v1728 = vsub.f32 %v1680, %v1708
        %v1729 = vsub.f32 %v1681, %v1710
        %v1730 = vsub.f32 %v1682, %v1712
        %v1731 = vsub.f32 %v1683, %v1714
        %v1732 = vsub.f32 %v1684, %v1716
        %v1733 = vmul.f32 %v1717, 1.442695
        %v1734 = vpow.pop %v1733
        %v1735 = vmul.f32 %v1718, 1.442695
        %v1736 = vpow.pop %v1735
        %v1737 = vmul.f32 %v1719, 1.442695
        %v1738 = vpow.pop %v1737
        %v1739 = vmul.f32 %v1720, 1.442695
        %v1740 = vpow.pop %v1739
        %v1741 = vmul.f32 %v1721, 1.442695
        %v1742 = vpow.pop %v1741
        %v1743 = vmul.f32 %v1722, 1.442695
        %v1744 = vpow.pop %v1743
        %v1745 = vmul.f32 %v1723, 1.442695
        %v1746 = vpow.pop %v1745
        %v1747 = vmul.f32 %v1724, 1.442695
        %v1748 = vpow.pop %v1747
        %v1749 = vmul.f32 %v1725, 1.442695
        %v1750 = vpow.pop %v1749
        %v1751 = vmul.f32 %v1726, 1.442695
        %v1752 = vpow.pop %v1751
        %v1753 = vmul.f32 %v1727, 1.442695
        %v1754 = vpow.pop %v1753
        %v1755 = vmul.f32 %v1728, 1.442695
        %v1756 = vpow.pop %v1755
        %v1757 = vmul.f32 %v1729, 1.442695
        %v1758 = vpow.pop %v1757
        %v1759 = vmul.f32 %v1730, 1.442695
        %v1760 = vpow.pop %v1759
        %v1761 = vmul.f32 %v1731, 1.442695
        %v1762 = vpow.pop %v1761
        %v1763 = vmul.f32 %v1732, 1.442695
        %v1764 = vpow.pop %v1763
        %1765 = vadd.xlane.f32.xlu0 %v1734
        %v1766 = vpop.xlane.xlu0 %1765
        %1767 = vadd.xlane.f32.xlu0 %v1736
        %v1768 = vpop.xlane.xlu0 %1767
        %1769 = vadd.xlane.f32.xlu0 %v1738
        %v1770 = vpop.xlane.xlu0 %1769
        %1771 = vadd.xlane.f32.xlu0 %v1740
        %v1772 = vpop.xlane.xlu0 %1771
        %1773 = vadd.xlane.f32.xlu0 %v1742
        %v1774 = vpop.xlane.xlu0 %1773
        %1775 = vadd.xlane.f32.xlu0 %v1744
        %v1776 = vpop.xlane.xlu0 %1775
        %1777 = vadd.xlane.f32.xlu0 %v1746
        %v1778 = vpop.xlane.xlu0 %1777
        %1779 = vadd.xlane.f32.xlu0 %v1748
        %v1780 = vpop.xlane.xlu0 %1779
        %1781 = vadd.xlane.f32.xlu0 %v1750
        %v1782 = vpop.xlane.xlu0 %1781
        %1783 = vadd.xlane.f32.xlu0 %v1752
        %v1784 = vpop.xlane.xlu0 %1783
        %1785 = vadd.xlane.f32.xlu0 %v1754
        %v1786 = vpop.xlane.xlu0 %1785
        %1787 = vadd.xlane.f32.xlu0 %v1756
        %v1788 = vpop.xlane.xlu0 %1787
        %1789 = vadd.xlane.f32.xlu0 %v1758
        %v1790 = vpop.xlane.xlu0 %1789
        %1791 = vadd.xlane.f32.xlu0 %v1760
        %v1792 = vpop.xlane.xlu0 %1791
        %1793 = vadd.xlane.f32.xlu0 %v1762
        %v1794 = vpop.xlane.xlu0 %1793
        %1795 = vadd.xlane.f32.xlu0 %v1764
        %v1796 = vpop.xlane.xlu0 %1795
        %v1797 = vrcp.pop %v1766
        %v1798 = vrcp.pop %v1768
        %v1799 = vrcp.pop %v1770
        %v1800 = vrcp.pop %v1772
        %v1801 = vrcp.pop %v1774
        %v1802 = vrcp.pop %v1776
        %v1803 = vrcp.pop %v1778
        %v1804 = vrcp.pop %v1780
        %v1805 = vrcp.pop %v1782
        %v1806 = vrcp.pop %v1784
        %v1807 = vrcp.pop %v1786
        %v1808 = vrcp.pop %v1788
        %v1809 = vrcp.pop %v1790
        %v1810 = vrcp.pop %v1792
        %v1811 = vrcp.pop %v1794
        %v1812 = vrcp.pop %v1796
        %v1813 = vmul.f32 %v1734, %v1797
        %v1814 = vmul.f32 %v1736, %v1798
        %v1815 = vmul.f32 %v1738, %v1799
        %v1816 = vmul.f32 %v1740, %v1800
        %v1817 = vmul.f32 %v1742, %v1801
        %v1818 = vmul.f32 %v1744, %v1802
        %v1819 = vmul.f32 %v1746, %v1803
        %v1820 = vmul.f32 %v1748, %v1804
        %v1821 = vmul.f32 %v1750, %v1805
        %v1822 = vmul.f32 %v1752, %v1806
        %v1823 = vmul.f32 %v1754, %v1807
        %v1824 = vmul.f32 %v1756, %v1808
        %v1825 = vmul.f32 %v1758, %v1809
        %v1826 = vmul.f32 %v1760, %v1810
        %v1827 = vmul.f32 %v1762, %v1811
        %v1828 = vmul.f32 %v1764, %v1812
        %v1829 = vpack.c.bf16 %v1814, %v1813
        %v1830 = vpack.c.bf16 %v1816, %v1815
        %v1831 = vpack.c.bf16 %v1818, %v1817
        %v1832 = vpack.c.bf16 %v1820, %v1819
        %v1833 = vpack.c.bf16 %v1822, %v1821
        %v1834 = vpack.c.bf16 %v1824, %v1823
        %v1835 = vpack.c.bf16 %v1826, %v1825
        %v1836 = vpack.c.bf16 %v1828, %v1827
        %v1853 = vunpack.c.l.b16 %v1460
        %v1854 = vunpack.c.l.b16 %v1461
        %v1855 = vunpack.c.l.b16 %v1462
        %v1856 = vunpack.c.l.b16 %v1463
        %v1857 = vunpack.c.l.b16 %v1464
        %v1858 = vunpack.c.l.b16 %v1465
        %v1859 = vunpack.c.l.b16 %v1466
        %v1860 = vunpack.c.l.b16 %v1467
        %v1861 = vunpack.c.l.b16 %v1468
        %v1862 = vunpack.c.l.b16 %v1469
        %v1863 = vunpack.c.l.b16 %v1470
        %v1864 = vunpack.c.l.b16 %v1471
        %v1865 = vunpack.c.l.b16 %v1472
        %v1866 = vunpack.c.l.b16 %v1473
        %v1867 = vunpack.c.l.b16 %v1474
        %v1868 = vunpack.c.l.b16 %v1475
        %v1869 = vpack.c.b16 %v1854, %v1853
        %v1870 = vpack.c.b16 %v1856, %v1855
        %v1871 = vpack.c.b16 %v1858, %v1857
        %v1872 = vpack.c.b16 %v1860, %v1859
        %v1873 = vpack.c.b16 %v1862, %v1861
        %v1874 = vpack.c.b16 %v1864, %v1863
        %v1875 = vpack.c.b16 %v1866, %v1865
        %v1876 = vpack.c.b16 %v1868, %v1867
        %1885 = vmatprep.subr.bf16.mxu0 0
        %1886 = vmatpush1.bf16.msra.mxu0 %v1876
        %1887 = vmatprep.subr.bf16.mxu0 0
        %1888 = vmatpush1.bf16.msra.mxu0 %v1875
        %1889 = vmatprep.subr.bf16.mxu0 0
        %1890 = vmatpush1.bf16.msra.mxu0 %v1874
        %1891 = vmatprep.subr.bf16.mxu0 0
        %1892 = vmatpush1.bf16.msra.mxu0 %v1873
        %1893 = vmatprep.subr.bf16.mxu0 0
        %1894 = vmatpush1.bf16.msra.mxu0 %v1872
        %1895 = vmatprep.subr.bf16.mxu0 0
        %1896 = vmatpush1.bf16.msra.mxu0 %v1871
        %1897 = vmatprep.subr.bf16.mxu0 0
        %1898 = vmatpush1.bf16.msra.mxu0 %v1870
        %1899 = vmatprep.subr.bf16.mxu0 0
        %1900 = vmatpush1.bf16.msra.mxu0 %v1869
        %1901 = vmatprep.subr.bf16.mxu0 0
        %1902 = vmatpush2.bf16.msra.mxu0 0
        %1903 = vmatprep.subr.bf16.mxu0 0
        %1904 = vmatpush2.bf16.msra.mxu0 0
        %1905 = vmatprep.subr.bf16.mxu0 0
        %1906 = vmatpush2.bf16.msra.mxu0 0
        %1907 = vmatprep.subr.bf16.mxu0 0
        %1908 = vmatpush2.bf16.msra.mxu0 0
        %1909 = vmatprep.subr.bf16.mxu0 0
        %1910 = vmatpush2.bf16.msra.mxu0 0
        %1911 = vmatprep.subr.bf16.mxu0 0
        %1912 = vmatpush2.bf16.msra.mxu0 0
        %1913 = vmatprep.subr.bf16.mxu0 0
        %1914 = vmatpush2.bf16.msra.mxu0 0
        %1915 = vmatprep.subr.bf16.mxu0 0
        %1916 = vmatpush2.bf16.msra.mxu0 0
        %1917 = vmatprep.mubr.bf16.mxu0 0
        %1918 = vmatmul.mubr.bf16.gmra.mxu0 %v1829
        %v1919 = vpop.f32.mrf.mxu0
        %v1920 = vadd.f32 0.0, %v1919
        %v1921 = vpop.f32.mrf.mxu0
        %v1922 = vpop.f32.mrf.mxu0
        %v1923 = vadd.f32 0.0, %v1922
        %v1924 = vpop.f32.mrf.mxu0
        %1925 = vmatprep.mubr.bf16.mxu0 0
        %1926 = vmatmul.mubr.bf16.gmra.mxu0 %v1830
        %v1927 = vpop.f32.mrf.mxu0
        %v1928 = vadd.f32 0.0, %v1927
        %v1929 = vpop.f32.mrf.mxu0
        %v1930 = vpop.f32.mrf.mxu0
        %v1931 = vadd.f32 0.0, %v1930
        %v1932 = vpop.f32.mrf.mxu0
        %1933 = vmatprep.mubr.bf16.mxu0 0
        %1934 = vmatmul.mubr.bf16.gmra.mxu0 %v1831
        %v1935 = vpop.f32.mrf.mxu0
        %v1936 = vadd.f32 0.0, %v1935
        %v1937 = vpop.f32.mrf.mxu0
        %v1938 = vpop.f32.mrf.mxu0
        %v1939 = vadd.f32 0.0, %v1938
        %v1940 = vpop.f32.mrf.mxu0
        %1941 = vmatprep.mubr.bf16.mxu0 0
        %1942 = vmatmul.mubr.bf16.gmra.mxu0 %v1832
        %v1943 = vpop.f32.mrf.mxu0
        %v1944 = vadd.f32 0.0, %v1943
        %v1945 = vpop.f32.mrf.mxu0
        %v1946 = vpop.f32.mrf.mxu0
        %v1947 = vadd.f32 0.0, %v1946
        %v1948 = vpop.f32.mrf.mxu0
        %1949 = vmatprep.mubr.bf16.mxu0 0
        %1950 = vmatmul.mubr.bf16.gmra.mxu0 %v1833
        %v1951 = vpop.f32.mrf.mxu0
        %v1952 = vadd.f32 0.0, %v1951
        %v1953 = vpop.f32.mrf.mxu0
        %v1954 = vpop.f32.mrf.mxu0
        %v1955 = vadd.f32 0.0, %v1954
        %v1956 = vpop.f32.mrf.mxu0
        %1957 = vmatprep.mubr.bf16.mxu0 0
        %1958 = vmatmul.mubr.bf16.gmra.mxu0 %v1834
        %v1959 = vpop.f32.mrf.mxu0
        %v1960 = vadd.f32 0.0, %v1959
        %v1961 = vpop.f32.mrf.mxu0
        %v1962 = vpop.f32.mrf.mxu0
        %v1963 = vadd.f32 0.0, %v1962
        %v1964 = vpop.f32.mrf.mxu0
        %1965 = vmatprep.mubr.bf16.mxu0 0
        %1966 = vmatmul.mubr.bf16.gmra.mxu0 %v1835
        %v1967 = vpop.f32.mrf.mxu0
        %v1968 = vadd.f32 0.0, %v1967
        %v1969 = vpop.f32.mrf.mxu0
        %v1970 = vpop.f32.mrf.mxu0
        %v1971 = vadd.f32 0.0, %v1970
        %v1972 = vpop.f32.mrf.mxu0
        %1973 = vmatprep.mubr.bf16.mxu0 0
        %1974 = vmatmul.mubr.bf16.gmra.mxu0 %v1836
        %v1975 = vpop.f32.mrf.mxu0
        %v1976 = vadd.f32 0.0, %v1975
        %v1977 = vpop.f32.mrf.mxu0
        %v1978 = vpop.f32.mrf.mxu0
        %v1979 = vadd.f32 0.0, %v1978
        %v1980 = vpop.f32.mrf.mxu0
        %1981 = vdwg.mxu0
        %s1982 = scalar_lea.vmem %s270, 256 [#allocation10]
        %1983 = vst [vmem:[%s1982] sm:$0xff] %v1920
        %1984 = vst [vmem:[%s1982 + $0x8] sm:$0xff] %v1923
        %1985 = vst [vmem:[%s1982 + $0x10] sm:$0xff] %v1928
        %1986 = vst [vmem:[%s1982 + $0x18] sm:$0xff] %v1931
        %1987 = vst [vmem:[%s1982 + $0x20] sm:$0xff] %v1936
        %1988 = vst [vmem:[%s1982 + $0x28] sm:$0xff] %v1939
        %1989 = vst [vmem:[%s1982 + $0x30] sm:$0xff] %v1944
        %1990 = vst [vmem:[%s1982 + $0x38] sm:$0xff] %v1947
        %1991 = vst [vmem:[%s1982 + $0x40] sm:$0xff] %v1952
        %1992 = vst [vmem:[%s1982 + $0x48] sm:$0xff] %v1955
        %1993 = vst [vmem:[%s1982 + $0x50] sm:$0xff] %v1960
        %1994 = vst [vmem:[%s1982 + $0x58] sm:$0xff] %v1963
        %1995 = vst [vmem:[%s1982 + $0x60] sm:$0xff] %v1968
        %1996 = vst [vmem:[%s1982 + $0x68] sm:$0xff] %v1971
        %1997 = vst [vmem:[%s1982 + $0x70] sm:$0xff] %v1976
        %1998 = vst [vmem:[%s1982 + $0x78] sm:$0xff] %v1979
        %s1999 = scalar_lea.vmem %s220, 192 [#allocation4]
        %v2000 = vld [vmem:[%s1999] sm:$0xf]
        %v2001 = vld [vmem:[%s1999 + $0x4] sm:$0xf]
        %v2002 = vld [vmem:[%s1999 + $0x8] sm:$0xf]
        %v2003 = vld [vmem:[%s1999 + $0xc] sm:$0xf]
        %v2004 = vld [vmem:[%s1999 + $0x10] sm:$0xf]
        %v2005 = vld [vmem:[%s1999 + $0x14] sm:$0xf]
        %v2006 = vld [vmem:[%s1999 + $0x18] sm:$0xf]
        %v2007 = vld [vmem:[%s1999 + $0x1c] sm:$0xf]
        %v2008 = vld [vmem:[%s1999 + $0x20] sm:$0xf]
        %v2009 = vld [vmem:[%s1999 + $0x24] sm:$0xf]
        %v2010 = vld [vmem:[%s1999 + $0x28] sm:$0xf]
        %v2011 = vld [vmem:[%s1999 + $0x2c] sm:$0xf]
        %v2012 = vld [vmem:[%s1999 + $0x30] sm:$0xf]
        %v2013 = vld [vmem:[%s1999 + $0x34] sm:$0xf]
        %v2014 = vld [vmem:[%s1999 + $0x38] sm:$0xf]
        %v2015 = vld [vmem:[%s1999 + $0x3c] sm:$0xf]
        %s2016 = scalar_lea.vmem %s229, 192 [#allocation7]
        %v2017 = vld [vmem:[%s2016] sm:$0xf]
        %v2018 = vld [vmem:[%s2016 + $0x4] sm:$0xf]
        %v2019 = vld [vmem:[%s2016 + $0x8] sm:$0xf]
        %v2020 = vld [vmem:[%s2016 + $0xc] sm:$0xf]
        %v2021 = vld [vmem:[%s2016 + $0x10] sm:$0xf]
        %v2022 = vld [vmem:[%s2016 + $0x14] sm:$0xf]
        %v2023 = vld [vmem:[%s2016 + $0x18] sm:$0xf]
        %v2024 = vld [vmem:[%s2016 + $0x1c] sm:$0xf]
        %v2025 = vld [vmem:[%s2016 + $0x20] sm:$0xf]
        %v2026 = vld [vmem:[%s2016 + $0x24] sm:$0xf]
        %v2027 = vld [vmem:[%s2016 + $0x28] sm:$0xf]
        %v2028 = vld [vmem:[%s2016 + $0x2c] sm:$0xf]
        %v2029 = vld [vmem:[%s2016 + $0x30] sm:$0xf]
        %v2030 = vld [vmem:[%s2016 + $0x34] sm:$0xf]
        %v2031 = vld [vmem:[%s2016 + $0x38] sm:$0xf]
        %v2032 = vld [vmem:[%s2016 + $0x3c] sm:$0xf]
        %s2033 = scalar_lea.vmem %s238, 192 [#allocation9]
        %v2034 = vld [vmem:[%s2033] sm:$0xf]
        %v2035 = vld [vmem:[%s2033 + $0x4] sm:$0xf]
        %v2036 = vld [vmem:[%s2033 + $0x8] sm:$0xf]
        %v2037 = vld [vmem:[%s2033 + $0xc] sm:$0xf]
        %v2038 = vld [vmem:[%s2033 + $0x10] sm:$0xf]
        %v2039 = vld [vmem:[%s2033 + $0x14] sm:$0xf]
        %v2040 = vld [vmem:[%s2033 + $0x18] sm:$0xf]
        %v2041 = vld [vmem:[%s2033 + $0x1c] sm:$0xf]
        %v2042 = vld [vmem:[%s2033 + $0x20] sm:$0xf]
        %v2043 = vld [vmem:[%s2033 + $0x24] sm:$0xf]
        %v2044 = vld [vmem:[%s2033 + $0x28] sm:$0xf]
        %v2045 = vld [vmem:[%s2033 + $0x2c] sm:$0xf]
        %v2046 = vld [vmem:[%s2033 + $0x30] sm:$0xf]
        %v2047 = vld [vmem:[%s2033 + $0x34] sm:$0xf]
        %v2048 = vld [vmem:[%s2033 + $0x38] sm:$0xf]
        %v2049 = vld [vmem:[%s2033 + $0x3c] sm:$0xf]
        %v2066 = vunpack.c.l.b16 %v2000
        %v2067 = vunpack.c.l.b16 %v2001
        %v2068 = vunpack.c.l.b16 %v2002
        %v2069 = vunpack.c.l.b16 %v2003
        %v2070 = vunpack.c.l.b16 %v2004
        %v2071 = vunpack.c.l.b16 %v2005
        %v2072 = vunpack.c.l.b16 %v2006
        %v2073 = vunpack.c.l.b16 %v2007
        %v2074 = vunpack.c.l.b16 %v2008
        %v2075 = vunpack.c.l.b16 %v2009
        %v2076 = vunpack.c.l.b16 %v2010
        %v2077 = vunpack.c.l.b16 %v2011
        %v2078 = vunpack.c.l.b16 %v2012
        %v2079 = vunpack.c.l.b16 %v2013
        %v2080 = vunpack.c.l.b16 %v2014
        %v2081 = vunpack.c.l.b16 %v2015
        %v2082 = vpack.c.b16 %v2067, %v2066
        %v2083 = vpack.c.b16 %v2069, %v2068
        %v2084 = vpack.c.b16 %v2071, %v2070
        %v2085 = vpack.c.b16 %v2073, %v2072
        %v2086 = vpack.c.b16 %v2075, %v2074
        %v2087 = vpack.c.b16 %v2077, %v2076
        %v2088 = vpack.c.b16 %v2079, %v2078
        %v2089 = vpack.c.b16 %v2081, %v2080
        %v2114 = vunpack.c.l.b16 %v2017
        %v2115 = vunpack.c.l.b16 %v2018
        %v2116 = vunpack.c.l.b16 %v2019
        %v2117 = vunpack.c.l.b16 %v2020
        %v2118 = vunpack.c.l.b16 %v2021
        %v2119 = vunpack.c.l.b16 %v2022
        %v2120 = vunpack.c.l.b16 %v2023
        %v2121 = vunpack.c.l.b16 %v2024
        %v2122 = vunpack.c.l.b16 %v2025
        %v2123 = vunpack.c.l.b16 %v2026
        %v2124 = vunpack.c.l.b16 %v2027
        %v2125 = vunpack.c.l.b16 %v2028
        %v2126 = vunpack.c.l.b16 %v2029
        %v2127 = vunpack.c.l.b16 %v2030
        %v2128 = vunpack.c.l.b16 %v2031
        %v2129 = vunpack.c.l.b16 %v2032
        %v2130 = vpack.c.b16 %v2115, %v2114
        %v2131 = vpack.c.b16 %v2117, %v2116
        %v2132 = vpack.c.b16 %v2119, %v2118
        %v2133 = vpack.c.b16 %v2121, %v2120
        %v2134 = vpack.c.b16 %v2123, %v2122
        %v2135 = vpack.c.b16 %v2125, %v2124
        %v2136 = vpack.c.b16 %v2127, %v2126
        %v2137 = vpack.c.b16 %v2129, %v2128
        %2146 = vmatprep.subr.bf16.mxu0 0
        %2147 = vmatpush1.bf16.xpose.msra.mxu0 %v2137
        %2148 = vmatprep.subr.bf16.mxu0 0
        %2149 = vmatpush1.bf16.xpose.msra.mxu0 %v2136
        %2150 = vmatprep.subr.bf16.mxu0 0
        %2151 = vmatpush1.bf16.xpose.msra.mxu0 %v2135
        %2152 = vmatprep.subr.bf16.mxu0 0
        %2153 = vmatpush1.bf16.xpose.msra.mxu0 %v2134
        %2154 = vmatprep.subr.bf16.mxu0 0
        %2155 = vmatpush1.bf16.xpose.msra.mxu0 %v2133
        %2156 = vmatprep.subr.bf16.mxu0 0
        %2157 = vmatpush1.bf16.xpose.msra.mxu0 %v2132
        %2158 = vmatprep.subr.bf16.mxu0 0
        %2159 = vmatpush1.bf16.xpose.msra.mxu0 %v2131
        %2160 = vmatprep.subr.bf16.mxu0 0
        %2161 = vmatpush1.bf16.xpose.msra.mxu0 %v2130
        %2162 = vmatprep.subr.bf16.mxu0 0
        %2163 = vmatpush2.bf16.xpose.msra.mxu0 0
        %2164 = vmatprep.subr.bf16.mxu0 0
        %2165 = vmatpush2.bf16.xpose.msra.mxu0 0
        %2166 = vmatprep.subr.bf16.mxu0 0
        %2167 = vmatpush2.bf16.xpose.msra.mxu0 0
        %2168 = vmatprep.subr.bf16.mxu0 0
        %2169 = vmatpush2.bf16.xpose.msra.mxu0 0
        %2170 = vmatprep.subr.bf16.mxu0 0
        %2171 = vmatpush2.bf16.xpose.msra.mxu0 0
        %2172 = vmatprep.subr.bf16.mxu0 0
        %2173 = vmatpush2.bf16.xpose.msra.mxu0 0
        %2174 = vmatprep.subr.bf16.mxu0 0
        %2175 = vmatpush2.bf16.xpose.msra.mxu0 0
        %2176 = vmatprep.subr.bf16.mxu0 0
        %2177 = vmatpush2.bf16.xpose.msra.mxu0 0
        %2178 = vmatprep.mubr.bf16.mxu0 0
        %2179 = vmatmul.mubr.bf16.gmra.mxu0 %v2082
        %v2180 = vpop.f32.mrf.mxu0
        %v2181 = vadd.f32 0.0, %v2180
        %v2182 = vpop.f32.mrf.mxu0
        %v2183 = vpop.f32.mrf.mxu0
        %v2184 = vadd.f32 0.0, %v2183
        %v2185 = vpop.f32.mrf.mxu0
        %2186 = vmatprep.mubr.bf16.mxu0 0
        %2187 = vmatmul.mubr.bf16.gmra.mxu0 %v2083
        %v2188 = vpop.f32.mrf.mxu0
        %v2189 = vadd.f32 0.0, %v2188
        %v2190 = vpop.f32.mrf.mxu0
        %v2191 = vpop.f32.mrf.mxu0
        %v2192 = vadd.f32 0.0, %v2191
        %v2193 = vpop.f32.mrf.mxu0
        %2194 = vmatprep.mubr.bf16.mxu0 0
        %2195 = vmatmul.mubr.bf16.gmra.mxu0 %v2084
        %v2196 = vpop.f32.mrf.mxu0
        %v2197 = vadd.f32 0.0, %v2196
        %v2198 = vpop.f32.mrf.mxu0
        %v2199 = vpop.f32.mrf.mxu0
        %v2200 = vadd.f32 0.0, %v2199
        %v2201 = vpop.f32.mrf.mxu0
        %2202 = vmatprep.mubr.bf16.mxu0 0
        %2203 = vmatmul.mubr.bf16.gmra.mxu0 %v2085
        %v2204 = vpop.f32.mrf.mxu0
        %v2205 = vadd.f32 0.0, %v2204
        %v2206 = vpop.f32.mrf.mxu0
        %v2207 = vpop.f32.mrf.mxu0
        %v2208 = vadd.f32 0.0, %v2207
        %v2209 = vpop.f32.mrf.mxu0
        %2210 = vmatprep.mubr.bf16.mxu0 0
        %2211 = vmatmul.mubr.bf16.gmra.mxu0 %v2086
        %v2212 = vpop.f32.mrf.mxu0
        %v2213 = vadd.f32 0.0, %v2212
        %v2214 = vpop.f32.mrf.mxu0
        %v2215 = vpop.f32.mrf.mxu0
        %v2216 = vadd.f32 0.0, %v2215
        %v2217 = vpop.f32.mrf.mxu0
        %2218 = vmatprep.mubr.bf16.mxu0 0
        %2219 = vmatmul.mubr.bf16.gmra.mxu0 %v2087
        %v2220 = vpop.f32.mrf.mxu0
        %v2221 = vadd.f32 0.0, %v2220
        %v2222 = vpop.f32.mrf.mxu0
        %v2223 = vpop.f32.mrf.mxu0
        %v2224 = vadd.f32 0.0, %v2223
        %v2225 = vpop.f32.mrf.mxu0
        %2226 = vmatprep.mubr.bf16.mxu0 0
        %2227 = vmatmul.mubr.bf16.gmra.mxu0 %v2088
        %v2228 = vpop.f32.mrf.mxu0
        %v2229 = vadd.f32 0.0, %v2228
        %v2230 = vpop.f32.mrf.mxu0
        %v2231 = vpop.f32.mrf.mxu0
        %v2232 = vadd.f32 0.0, %v2231
        %v2233 = vpop.f32.mrf.mxu0
        %2234 = vmatprep.mubr.bf16.mxu0 0
        %2235 = vmatmul.mubr.bf16.gmra.mxu0 %v2089
        %v2236 = vpop.f32.mrf.mxu0
        %v2237 = vadd.f32 0.0, %v2236
        %v2238 = vpop.f32.mrf.mxu0
        %v2239 = vpop.f32.mrf.mxu0
        %v2240 = vadd.f32 0.0, %v2239
        %v2241 = vpop.f32.mrf.mxu0
        %2242 = vdwg.mxu0
        %v2243 = vmul.f32 %v2181, %v521
        %v2244 = vmul.f32 %v2184, %v521
        %v2245 = vmul.f32 %v2189, %v521
        %v2246 = vmul.f32 %v2192, %v521
        %v2247 = vmul.f32 %v2197, %v521
        %v2248 = vmul.f32 %v2200, %v521
        %v2249 = vmul.f32 %v2205, %v521
        %v2250 = vmul.f32 %v2208, %v521
        %v2251 = vmul.f32 %v2213, %v521
        %v2252 = vmul.f32 %v2216, %v521
        %v2253 = vmul.f32 %v2221, %v521
        %v2254 = vmul.f32 %v2224, %v521
        %v2255 = vmul.f32 %v2229, %v521
        %v2256 = vmul.f32 %v2232, %v521
        %v2257 = vmul.f32 %v2237, %v521
        %v2258 = vmul.f32 %v2240, %v521
        %2259 = vmax.xlane.f32.xlu0 %v2243
        %v2260 = vpop.xlane.xlu0 %2259
        %2261 = vmax.xlane.f32.xlu0 %v2244
        %v2262 = vpop.xlane.xlu0 %2261
        %2263 = vmax.xlane.f32.xlu0 %v2245
        %v2264 = vpop.xlane.xlu0 %2263
        %2265 = vmax.xlane.f32.xlu0 %v2246
        %v2266 = vpop.xlane.xlu0 %2265
        %2267 = vmax.xlane.f32.xlu0 %v2247
        %v2268 = vpop.xlane.xlu0 %2267
        %2269 = vmax.xlane.f32.xlu0 %v2248
        %v2270 = vpop.xlane.xlu0 %2269
        %2271 = vmax.xlane.f32.xlu0 %v2249
        %v2272 = vpop.xlane.xlu0 %2271
        %2273 = vmax.xlane.f32.xlu0 %v2250
        %v2274 = vpop.xlane.xlu0 %2273
        %2275 = vmax.xlane.f32.xlu0 %v2251
        %v2276 = vpop.xlane.xlu0 %2275
        %2277 = vmax.xlane.f32.xlu0 %v2252
        %v2278 = vpop.xlane.xlu0 %2277
        %2279 = vmax.xlane.f32.xlu0 %v2253
        %v2280 = vpop.xlane.xlu0 %2279
        %2281 = vmax.xlane.f32.xlu0 %v2254
        %v2282 = vpop.xlane.xlu0 %2281
        %2283 = vmax.xlane.f32.xlu0 %v2255
        %v2284 = vpop.xlane.xlu0 %2283
        %2285 = vmax.xlane.f32.xlu0 %v2256
        %v2286 = vpop.xlane.xlu0 %2285
        %2287 = vmax.xlane.f32.xlu0 %v2257
        %v2288 = vpop.xlane.xlu0 %2287
        %2289 = vmax.xlane.f32.xlu0 %v2258
        %v2290 = vpop.xlane.xlu0 %2289
        %v2291 = vsub.f32 %v2243, %v2260
        %v2292 = vsub.f32 %v2244, %v2262
        %v2293 = vsub.f32 %v2245, %v2264
        %v2294 = vsub.f32 %v2246, %v2266
        %v2295 = vsub.f32 %v2247, %v2268
        %v2296 = vsub.f32 %v2248, %v2270
        %v2297 = vsub.f32 %v2249, %v2272
        %v2298 = vsub.f32 %v2250, %v2274
        %v2299 = vsub.f32 %v2251, %v2276
        %v2300 = vsub.f32 %v2252, %v2278
        %v2301 = vsub.f32 %v2253, %v2280
        %v2302 = vsub.f32 %v2254, %v2282
        %v2303 = vsub.f32 %v2255, %v2284
        %v2304 = vsub.f32 %v2256, %v2286
        %v2305 = vsub.f32 %v2257, %v2288
        %v2306 = vsub.f32 %v2258, %v2290
        %v2307 = vmul.f32 %v2291, 1.442695
        %v2308 = vpow.pop %v2307
        %v2309 = vmul.f32 %v2292, 1.442695
        %v2310 = vpow.pop %v2309
        %v2311 = vmul.f32 %v2293, 1.442695
        %v2312 = vpow.pop %v2311
        %v2313 = vmul.f32 %v2294, 1.442695
        %v2314 = vpow.pop %v2313
        %v2315 = vmul.f32 %v2295, 1.442695
        %v2316 = vpow.pop %v2315
        %v2317 = vmul.f32 %v2296, 1.442695
        %v2318 = vpow.pop %v2317
        %v2319 = vmul.f32 %v2297, 1.442695
        %v2320 = vpow.pop %v2319
        %v2321 = vmul.f32 %v2298, 1.442695
        %v2322 = vpow.pop %v2321
        %v2323 = vmul.f32 %v2299, 1.442695
        %v2324 = vpow.pop %v2323
        %v2325 = vmul.f32 %v2300, 1.442695
        %v2326 = vpow.pop %v2325
        %v2327 = vmul.f32 %v2301, 1.442695
        %v2328 = vpow.pop %v2327
        %v2329 = vmul.f32 %v2302, 1.442695
        %v2330 = vpow.pop %v2329
        %v2331 = vmul.f32 %v2303, 1.442695
        %v2332 = vpow.pop %v2331
        %v2333 = vmul.f32 %v2304, 1.442695
        %v2334 = vpow.pop %v2333
        %v2335 = vmul.f32 %v2305, 1.442695
        %v2336 = vpow.pop %v2335
        %v2337 = vmul.f32 %v2306, 1.442695
        %v2338 = vpow.pop %v2337
        %2339 = vadd.xlane.f32.xlu0 %v2308
        %v2340 = vpop.xlane.xlu0 %2339
        %2341 = vadd.xlane.f32.xlu0 %v2310
        %v2342 = vpop.xlane.xlu0 %2341
        %2343 = vadd.xlane.f32.xlu0 %v2312
        %v2344 = vpop.xlane.xlu0 %2343
        %2345 = vadd.xlane.f32.xlu0 %v2314
        %v2346 = vpop.xlane.xlu0 %2345
        %2347 = vadd.xlane.f32.xlu0 %v2316
        %v2348 = vpop.xlane.xlu0 %2347
        %2349 = vadd.xlane.f32.xlu0 %v2318
        %v2350 = vpop.xlane.xlu0 %2349
        %2351 = vadd.xlane.f32.xlu0 %v2320
        %v2352 = vpop.xlane.xlu0 %2351
        %2353 = vadd.xlane.f32.xlu0 %v2322
        %v2354 = vpop.xlane.xlu0 %2353
        %2355 = vadd.xlane.f32.xlu0 %v2324
        %v2356 = vpop.xlane.xlu0 %2355
        %2357 = vadd.xlane.f32.xlu0 %v2326
        %v2358 = vpop.xlane.xlu0 %2357
        %2359 = vadd.xlane.f32.xlu0 %v2328
        %v2360 = vpop.xlane.xlu0 %2359
        %2361 = vadd.xlane.f32.xlu0 %v2330
        %v2362 = vpop.xlane.xlu0 %2361
        %2363 = vadd.xlane.f32.xlu0 %v2332
        %v2364 = vpop.xlane.xlu0 %2363
        %2365 = vadd.xlane.f32.xlu0 %v2334
        %v2366 = vpop.xlane.xlu0 %2365
        %2367 = vadd.xlane.f32.xlu0 %v2336
        %v2368 = vpop.xlane.xlu0 %2367
        %2369 = vadd.xlane.f32.xlu0 %v2338
        %v2370 = vpop.xlane.xlu0 %2369
        %v2371 = vrcp.pop %v2340
        %v2372 = vrcp.pop %v2342
        %v2373 = vrcp.pop %v2344
        %v2374 = vrcp.pop %v2346
        %v2375 = vrcp.pop %v2348
        %v2376 = vrcp.pop %v2350
        %v2377 = vrcp.pop %v2352
        %v2378 = vrcp.pop %v2354
        %v2379 = vrcp.pop %v2356
        %v2380 = vrcp.pop %v2358
        %v2381 = vrcp.pop %v2360
        %v2382 = vrcp.pop %v2362
        %v2383 = vrcp.pop %v2364
        %v2384 = vrcp.pop %v2366
        %v2385 = vrcp.pop %v2368
        %v2386 = vrcp.pop %v2370
        %v2387 = vmul.f32 %v2308, %v2371
        %v2388 = vmul.f32 %v2310, %v2372
        %v2389 = vmul.f32 %v2312, %v2373
        %v2390 = vmul.f32 %v2314, %v2374
        %v2391 = vmul.f32 %v2316, %v2375
        %v2392 = vmul.f32 %v2318, %v2376
        %v2393 = vmul.f32 %v2320, %v2377
        %v2394 = vmul.f32 %v2322, %v2378
        %v2395 = vmul.f32 %v2324, %v2379
        %v2396 = vmul.f32 %v2326, %v2380
        %v2397 = vmul.f32 %v2328, %v2381
        %v2398 = vmul.f32 %v2330, %v2382
        %v2399 = vmul.f32 %v2332, %v2383
        %v2400 = vmul.f32 %v2334, %v2384
        %v2401 = vmul.f32 %v2336, %v2385
        %v2402 = vmul.f32 %v2338, %v2386
        %v2403 = vpack.c.bf16 %v2388, %v2387
        %v2404 = vpack.c.bf16 %v2390, %v2389
        %v2405 = vpack.c.bf16 %v2392, %v2391
        %v2406 = vpack.c.bf16 %v2394, %v2393
        %v2407 = vpack.c.bf16 %v2396, %v2395
        %v2408 = vpack.c.bf16 %v2398, %v2397
        %v2409 = vpack.c.bf16 %v2400, %v2399
        %v2410 = vpack.c.bf16 %v2402, %v2401
        %v2427 = vunpack.c.l.b16 %v2034
        %v2428 = vunpack.c.l.b16 %v2035
        %v2429 = vunpack.c.l.b16 %v2036
        %v2430 = vunpack.c.l.b16 %v2037
        %v2431 = vunpack.c.l.b16 %v2038
        %v2432 = vunpack.c.l.b16 %v2039
        %v2433 = vunpack.c.l.b16 %v2040
        %v2434 = vunpack.c.l.b16 %v2041
        %v2435 = vunpack.c.l.b16 %v2042
        %v2436 = vunpack.c.l.b16 %v2043
        %v2437 = vunpack.c.l.b16 %v2044
        %v2438 = vunpack.c.l.b16 %v2045
        %v2439 = vunpack.c.l.b16 %v2046
        %v2440 = vunpack.c.l.b16 %v2047
        %v2441 = vunpack.c.l.b16 %v2048
        %v2442 = vunpack.c.l.b16 %v2049
        %v2443 = vpack.c.b16 %v2428, %v2427
        %v2444 = vpack.c.b16 %v2430, %v2429
        %v2445 = vpack.c.b16 %v2432, %v2431
        %v2446 = vpack.c.b16 %v2434, %v2433
        %v2447 = vpack.c.b16 %v2436, %v2435
        %v2448 = vpack.c.b16 %v2438, %v2437
        %v2449 = vpack.c.b16 %v2440, %v2439
        %v2450 = vpack.c.b16 %v2442, %v2441
        %2459 = vmatprep.subr.bf16.mxu0 0
        %2460 = vmatpush1.bf16.msra.mxu0 %v2450
        %2461 = vmatprep.subr.bf16.mxu0 0
        %2462 = vmatpush1.bf16.msra.mxu0 %v2449
        %2463 = vmatprep.subr.bf16.mxu0 0
        %2464 = vmatpush1.bf16.msra.mxu0 %v2448
        %2465 = vmatprep.subr.bf16.mxu0 0
        %2466 = vmatpush1.bf16.msra.mxu0 %v2447
        %2467 = vmatprep.subr.bf16.mxu0 0
        %2468 = vmatpush1.bf16.msra.mxu0 %v2446
        %2469 = vmatprep.subr.bf16.mxu0 0
        %2470 = vmatpush1.bf16.msra.mxu0 %v2445
        %2471 = vmatprep.subr.bf16.mxu0 0
        %2472 = vmatpush1.bf16.msra.mxu0 %v2444
        %2473 = vmatprep.subr.bf16.mxu0 0
        %2474 = vmatpush1.bf16.msra.mxu0 %v2443
        %2475 = vmatprep.subr.bf16.mxu0 0
        %2476 = vmatpush2.bf16.msra.mxu0 0
        %2477 = vmatprep.subr.bf16.mxu0 0
        %2478 = vmatpush2.bf16.msra.mxu0 0
        %2479 = vmatprep.subr.bf16.mxu0 0
        %2480 = vmatpush2.bf16.msra.mxu0 0
        %2481 = vmatprep.subr.bf16.mxu0 0
        %2482 = vmatpush2.bf16.msra.mxu0 0
        %2483 = vmatprep.subr.bf16.mxu0 0
        %2484 = vmatpush2.bf16.msra.mxu0 0
        %2485 = vmatprep.subr.bf16.mxu0 0
        %2486 = vmatpush2.bf16.msra.mxu0 0
        %2487 = vmatprep.subr.bf16.mxu0 0
        %2488 = vmatpush2.bf16.msra.mxu0 0
        %2489 = vmatprep.subr.bf16.mxu0 0
        %2490 = vmatpush2.bf16.msra.mxu0 0
        %2491 = vmatprep.mubr.bf16.mxu0 0
        %2492 = vmatmul.mubr.bf16.gmra.mxu0 %v2403
        %v2493 = vpop.f32.mrf.mxu0
        %v2494 = vadd.f32 0.0, %v2493
        %v2495 = vpop.f32.mrf.mxu0
        %v2496 = vpop.f32.mrf.mxu0
        %v2497 = vadd.f32 0.0, %v2496
        %v2498 = vpop.f32.mrf.mxu0
        %2499 = vmatprep.mubr.bf16.mxu0 0
        %2500 = vmatmul.mubr.bf16.gmra.mxu0 %v2404
        %v2501 = vpop.f32.mrf.mxu0
        %v2502 = vadd.f32 0.0, %v2501
        %v2503 = vpop.f32.mrf.mxu0
        %v2504 = vpop.f32.mrf.mxu0
        %v2505 = vadd.f32 0.0, %v2504
        %v2506 = vpop.f32.mrf.mxu0
        %2507 = vmatprep.mubr.bf16.mxu0 0
        %2508 = vmatmul.mubr.bf16.gmra.mxu0 %v2405
        %v2509 = vpop.f32.mrf.mxu0
        %v2510 = vadd.f32 0.0, %v2509
        %v2511 = vpop.f32.mrf.mxu0
        %v2512 = vpop.f32.mrf.mxu0
        %v2513 = vadd.f32 0.0, %v2512
        %v2514 = vpop.f32.mrf.mxu0
        %2515 = vmatprep.mubr.bf16.mxu0 0
        %2516 = vmatmul.mubr.bf16.gmra.mxu0 %v2406
        %v2517 = vpop.f32.mrf.mxu0
        %v2518 = vadd.f32 0.0, %v2517
        %v2519 = vpop.f32.mrf.mxu0
        %v2520 = vpop.f32.mrf.mxu0
        %v2521 = vadd.f32 0.0, %v2520
        %v2522 = vpop.f32.mrf.mxu0
        %2523 = vmatprep.mubr.bf16.mxu0 0
        %2524 = vmatmul.mubr.bf16.gmra.mxu0 %v2407
        %v2525 = vpop.f32.mrf.mxu0
        %v2526 = vadd.f32 0.0, %v2525
        %v2527 = vpop.f32.mrf.mxu0
        %v2528 = vpop.f32.mrf.mxu0
        %v2529 = vadd.f32 0.0, %v2528
        %v2530 = vpop.f32.mrf.mxu0
        %2531 = vmatprep.mubr.bf16.mxu0 0
        %2532 = vmatmul.mubr.bf16.gmra.mxu0 %v2408
        %v2533 = vpop.f32.mrf.mxu0
        %v2534 = vadd.f32 0.0, %v2533
        %v2535 = vpop.f32.mrf.mxu0
        %v2536 = vpop.f32.mrf.mxu0
        %v2537 = vadd.f32 0.0, %v2536
        %v2538 = vpop.f32.mrf.mxu0
        %2539 = vmatprep.mubr.bf16.mxu0 0
        %2540 = vmatmul.mubr.bf16.gmra.mxu0 %v2409
        %v2541 = vpop.f32.mrf.mxu0
        %v2542 = vadd.f32 0.0, %v2541
        %v2543 = vpop.f32.mrf.mxu0
        %v2544 = vpop.f32.mrf.mxu0
        %v2545 = vadd.f32 0.0, %v2544
        %v2546 = vpop.f32.mrf.mxu0
        %2547 = vmatprep.mubr.bf16.mxu0 0
        %2548 = vmatmul.mubr.bf16.gmra.mxu0 %v2410
        %v2549 = vpop.f32.mrf.mxu0
        %v2550 = vadd.f32 0.0, %v2549
        %v2551 = vpop.f32.mrf.mxu0
        %v2552 = vpop.f32.mrf.mxu0
        %v2553 = vadd.f32 0.0, %v2552
        %v2554 = vpop.f32.mrf.mxu0
        %2555 = vdwg.mxu0
        %s2556 = scalar_lea.vmem %s270, 384 [#allocation10]
        %2557 = vst [vmem:[%s2556] sm:$0xff] %v2494
        %2558 = vst [vmem:[%s2556 + $0x8] sm:$0xff] %v2497
        %2559 = vst [vmem:[%s2556 + $0x10] sm:$0xff] %v2502
        %2560 = vst [vmem:[%s2556 + $0x18] sm:$0xff] %v2505
        %2561 = vst [vmem:[%s2556 + $0x20] sm:$0xff] %v2510
        %2562 = vst [vmem:[%s2556 + $0x28] sm:$0xff] %v2513
        %2563 = vst [vmem:[%s2556 + $0x30] sm:$0xff] %v2518
        %2564 = vst [vmem:[%s2556 + $0x38] sm:$0xff] %v2521
        %2565 = vst [vmem:[%s2556 + $0x40] sm:$0xff] %v2526
        %2566 = vst [vmem:[%s2556 + $0x48] sm:$0xff] %v2529
        %2567 = vst [vmem:[%s2556 + $0x50] sm:$0xff] %v2534
        %2568 = vst [vmem:[%s2556 + $0x58] sm:$0xff] %v2537
        %2569 = vst [vmem:[%s2556 + $0x60] sm:$0xff] %v2542
        %2570 = vst [vmem:[%s2556 + $0x68] sm:$0xff] %v2545
        %2571 = vst [vmem:[%s2556 + $0x70] sm:$0xff] %v2550
        %2572 = vst [vmem:[%s2556 + $0x78] sm:$0xff] %v2553
        %s2573 = sand.u32 %s111, 1
        %s2574 = scalar_lea.sflag [#allocation6], %s2573
        %s2575 = sand.u32 %s111, 1
        %s2576 = smul.addr %s2575, 512
        %s2577 = scalar_lea.vmem [#allocation10], %s2576
        // Predicated region
        $region45: #{tpu_custom_call.1} parent=31 // pred_check
          %p2578 = pneg %p121
        $region46: #{tpu_custom_call.1} parent=31 // pred_check_branch
          %2580 = sbr.rel (%p2578) target = $region48
        $region47: #{tpu_custom_call.1} parent=31 // pred_region
          %s2581 = smul.u32 4, %s25
          %s2583 = ssub.s32 8192, 8192
          %2584 = vsyncadd %s2574, %s2583
          %s2585 = smul.addr %s2581, 16
          %s2586 = smul.addr %s2585, 128
          %s2587 = scalar_lea.hbm %s4, %s2586
          %s2588 = sshll.u32 %s2577, 4
          %s2589 = int_to_ptr.vmem [resolvable:$true] %s2588
          %2594 = dma.vmem_to_hbm [thread:$0]  %s2589, 8192, %s2587, %s2574, 128, 128, 8
        $region48: #{tpu_custom_call.1} parent=31 // pred_fallthru
          _
      $region32: #{tpu_custom_call.1} parent=5 // pred_fallthru
        _
      %p2595 = scmp.le.s32.totalorder 2, %s20
      // Predicated region
      $region49: #{tpu_custom_call.1} parent=5 // pred_check
        %p2596 = pneg %p2595
      $region50: #{tpu_custom_call.1} parent=5 // pred_check_branch
        %2598 = sbr.rel (%p2596) target = $region52
      $region51: #{tpu_custom_call.1} parent=5 // pred_region
        %s2599 = ssub.s32 %s20, 2
        // Predicated region
        $region53: #{tpu_custom_call.1} parent=51 // pred_check
          %p2600 = pneg %p127
        $region54: #{tpu_custom_call.1} parent=51 // pred_check_branch
          %2602 = sbr.rel (%p2600) target = $region56
        $region55: #{tpu_custom_call.1} parent=51 // pred_region
          %s2603 = sand.u32 %s112, 1
          %s2604 = scalar_lea.sflag [#allocation6], %s2603
          %s2605 = sand.u32 %s112, 1
          %s2606 = smul.addr %s2605, 512
          %s2607 = scalar_lea.vmem [#allocation10], %s2606
          %2608 = dma.done %s2604, 8192
        $region56: #{tpu_custom_call.1} parent=51 // pred_fallthru
          _
      $region52: #{tpu_custom_call.1} parent=5 // pred_fallthru
        _
    $region6: #{tpu_custom_call.1} parent=1 // loop_footer
      %s24 = sadd.s32 1, %s20
    $region7: #{tpu_custom_call.1} parent=1 // loop_footer_branch
      %19 = sbr.rel target = $region3
    $region8: #{tpu_custom_call.1} parent=1 // loop_exit
      _
    %2609 = vsyncpa [#allocation5], 1
    %s2610 = scalar_lea.sflag [#allocation5], 1
    %2611 = vsyncpa %s2610, 1
    %2612 = vsyncpa [#allocation8], 1
    %s2613 = scalar_lea.sflag [#allocation8], 1
    %2614 = vsyncpa %s2613, 1
    %2615 = vsyncpa [#allocation6], 1
    %s2616 = scalar_lea.sflag [#allocation6], 1
    %2617 = vsyncpa %s2616, 1

</llo_original>
